<compile_context>
chip_gen: v5e
topology: v5e:2x2
jax: 0.10.0
libtpu: 0.0.40
codegen_flags: <defaults>
</compile_context>

<pallas_src>
import functools

import jax
import jax.numpy as jnp
import numpy as np
from jax.experimental import pallas as pl
from jax.experimental.pallas import tpu as pltpu


def _round_up(x, m):
    return ((x + m - 1) // m) * m


def _largest_tile(n_pad, want):
    """Largest multiple of 128 that divides n_pad and is <= want (n_pad % 128 == 0)."""
    t = min(want, n_pad)
    t -= t % 128
    t = max(t, 128)
    while n_pad % t:
        t -= 128
    return t


def _vmem_capacity_bytes():
    """Per-core VMEM capacity: 128 MiB on v5e/v6e, 64 MiB on v7x."""
    try:
        return int(pltpu.get_tpu_info().vmem_capacity_bytes)
    except Exception:
        return 64 << 20  # conservative fallback, safe on every generation


def _lstm_gnn_cell_kernel(a_ref, zw_ref, b_ref, cprev_ref, out_ref, acc_ref,
                          *, tk, hidden, zw_resident):
    """Grid = (row blocks of A, K blocks over A's columns); K (reduction) is last.

    a_ref    : (tm, tk)                adjacency tile (matmul dtype)
    zw_ref   : (N_pad, 4H) resident OR (tk, 4H) streamed  -- precomputed Z @ Wsum
    b_ref    : (tm, 4H) f32            stacked per-node gate biases, row block
    cprev_ref: (tm, H)  f32            c_{t-1} rows for the elementwise update
    out_ref  : (tm, 2H) f32            [h_new | c_new] lane-dense output slab
    acc_ref  : (tm, 4H) f32            gate pre-activation accumulator (scratch)
    """
    k = pl.program_id(1)

    @pl.when(k == 0)
    def _init():
        acc_ref[...] = jnp.zeros_like(acc_ref)

    if zw_resident:
        start = pl.multiple_of(k * tk, tk)
        zw_blk = zw_ref[pl.ds(start, tk), :]
    else:
        zw_blk = zw_ref[...]

    # The single MXU contraction: partial A @ (Z @ Wsum), accumulated in f32.
    acc_ref[...] += jnp.dot(a_ref[...], zw_blk, preferred_element_type=jnp.float32)

    @pl.when(k == pl.num_programs(1) - 1)
    def _finalize():
        h = hidden
        g = acc_ref[...] + b_ref[...]                    # (tm, 4H) pre-activations
        # Gate order [i, f, o, g].  (Gate slices land at H-lane offsets; pad each gate
        # slot to 128 lanes only if this epilogue ever shows up in the bundle.)
        gate_i = jax.nn.sigmoid(g[:, 0 * h:1 * h])
        gate_f = jax.nn.sigmoid(g[:, 1 * h:2 * h])
        gate_o = jax.nn.sigmoid(g[:, 2 * h:3 * h])
        c_vir = jnp.tanh(jnp.tanh(g[:, 3 * h:4 * h]))    # double tanh (module does this)

        c_new = jax.nn.sigmoid(gate_f * cprev_ref[...] + gate_i * c_vir)
        h_new = jnp.tanh(c_new) * gate_o
        out_ref[...] = jnp.concatenate([h_new, c_new], axis=1).astype(out_ref.dtype)


def lstm_gnn_cell(X, A, h_prev, c_prev, WU, WW, WV, B, *,
                  tm=None, tk=None, matmul_dtype=jnp.bfloat16, zw_resident=None):
    """Fused LSTMGNNCell forward.

    X: (N, F), A: (N, N), h_prev/c_prev: (N, H)
    WU: (4, F, H), WW: (4, H, H), WV: (3, H, H)   gate order [i, f, o, g]
    B : (4, N, H) per-node biases.
    Returns (h_new, c_new), each (N, H) float32.
    """
    N, F = X.shape
    H = h_prev.shape[1]
    G4 = 4 * H

    # ---- wrapper-side fusion + structural reorder:  G = A @ (Z @ Wsum) ----------
    Z = jnp.concatenate([X, h_prev, c_prev], axis=1).astype(jnp.float32)     # (N, F+2H)
    Wx = jnp.concatenate([WU[0], WU[1], WU[2], WU[3]], axis=1)               # (F, 4H)
    Wh = jnp.concatenate([WW[0], WW[1], WW[2], WW[3]], axis=1)               # (H, 4H)
    Wc = jnp.concatenate([WV[0], WV[1], WV[2],
                          jnp.zeros((H, H), dtype=WV.dtype)], axis=1)        # (H, 4H) (g has no V)
    Wsum = jnp.concatenate([Wx, Wh, Wc], axis=0).astype(jnp.float32)         # (F+2H, 4H)
    ZW = jnp.dot(Z, Wsum, preferred_element_type=jnp.float32)                # (N, 4H), tiny matmul
    Bsum = jnp.concatenate([B[0], B[1], B[2], B[3]], axis=1).astype(jnp.float32)  # (N, 4H)

    # ---- pad N to a multiple of 128 so every BlockSpec obeys the (8,128) rule ---
    N_pad = _round_up(N, 128)
    if tm is None:
        tm = _largest_tile(N_pad, 512)
    if tk is None:
        tk = _largest_tile(N_pad, 512)
    assert tm % 128 == 0 and tk % 128 == 0, "tile sizes must be multiples of 128"
    assert N_pad % tm == 0 and N_pad % tk == 0, "tiles must divide the padded node count"

    pad = N_pad - N
    A_m = jnp.pad(A.astype(matmul_dtype), ((0, pad), (0, pad)))
    ZW_m = jnp.pad(ZW, ((0, pad), (0, 0))).astype(matmul_dtype)
    B_f = jnp.pad(Bsum, ((0, pad), (0, 0)))
    c_f = jnp.pad(c_prev.astype(jnp.float32), ((0, pad), (0, 0)))

    itm = jnp.dtype(matmul_dtype).itemsize
    lane = lambda d: _round_up(d, 128)
    sub = lambda d: _round_up(d, 8)

    # Keep ZW fully VMEM-resident (read from HBM exactly once) whenever it is small.
    if zw_resident is None:
        zw_resident = 2 * sub(N_pad) * lane(G4) * itm <= (8 << 20)

    grid = (N_pad // tm, N_pad // tk)

    # ---- generation-aware VMEM budget (double-buffered operands + f32 acc) ------
    zw_bytes = (2 * sub(N_pad) * lane(G4) * itm) if zw_resident \
        else (2 * sub(tk) * lane(G4) * itm)
    vmem_need = (2 * sub(tm) * lane(tk) * itm          # A tile
                 + zw_bytes                            # ZW
                 + 2 * sub(tm) * lane(G4) * 4          # bias slab
                 + 2 * sub(tm) * lane(H) * 4           # c_prev rows
                 + 2 * sub(tm) * lane(2 * H) * 4       # output slab
                 + sub(tm) * lane(G4) * 4)             # accumulator scratch
    cap = _vmem_capacity_bytes()                       # 128 MiB v5e/v6e, 64 MiB v7x
    vmem_limit = max(vmem_need + vmem_need // 2 + (4 << 20), 32 << 20)
    vmem_limit = int(min(vmem_limit, int(cap * 0.85)))

    zw_reads = 1 if zw_resident else grid[0]
    cost = pl.CostEstimate(
        flops=2 * N_pad * N_pad * G4,
        transcendentals=7 * N_pad * H,
        bytes_accessed=int(N_pad * N_pad * itm             # A (dominant stream)
                           + zw_reads * N_pad * G4 * itm   # ZW (re-read factor honest)
                           + N_pad * G4 * 4                # biases
                           + N_pad * H * 4                 # c_prev
                           + N_pad * 2 * H * 4))           # output

    if zw_resident:
        zw_spec = pl.BlockSpec((N_pad, G4), lambda i, k: (0, 0))   # resident, read once
    else:
        zw_spec = pl.BlockSpec((tk, G4), lambda i, k: (k, 0))      # streamed per K block

    kernel = functools.partial(_lstm_gnn_cell_kernel,
                               tk=tk, hidden=H, zw_resident=zw_resident)

    hc = pl.pallas_call(
        kernel,
        out_shape=jax.ShapeDtypeStruct((N_pad, 2 * H), jnp.float32),
        grid_spec=pltpu.PrefetchScalarGridSpec(
            num_scalar_prefetch=0,
            grid=grid,
            in_specs=[
                pl.BlockSpec((tm, tk), lambda i, k: (i, k)),       # A tile
                zw_spec,                                           # ZW
                pl.BlockSpec((tm, G4), lambda i, k: (i, 0)),       # stacked biases, row block
                pl.BlockSpec((tm, H), lambda i, k: (i, 0)),        # c_prev, row block
            ],
            out_specs=pl.BlockSpec((tm, 2 * H), lambda i, k: (i, 0)),
            scratch_shapes=[pltpu.VMEM((tm, G4), jnp.float32)],
        ),
        compiler_params=pltpu.CompilerParams(
            dimension_semantics=("parallel", "arbitrary"),
            vmem_limit_bytes=vmem_limit),
        cost_estimate=cost,
    )(A_m, ZW_m, B_f, c_f)

    return hc[:N, :H], hc[:N, H:]


def lstm_gnn_cell_ref(X, A, h_prev, c_prev, WU, WW, WV, B):
    """Pure-JAX reference mirroring the PyTorch forward."""
    def gconv(src, w):
        return (A @ src) @ w

    i = jax.nn.sigmoid(gconv(X, WU[0]) + gconv(h_prev, WW[0])
                       + gconv(c_prev, WV[0]) + B[0])
    f = jax.nn.sigmoid(gconv(X, WU[1]) + gconv(h_prev, WW[1])
                       + gconv(c_prev, WV[1]) + B[1])
    o = jax.nn.sigmoid(gconv(X, WU[2]) + gconv(h_prev, WW[2])
                       + gconv(c_prev, WV[2]) + B[2])
    c_vir = jnp.tanh(jnp.tanh(gconv(X, WU[3]) + gconv(h_prev, WW[3]) + B[3]))
    c = jax.nn.sigmoid(f * c_prev + i * c_vir)
    h = jnp.tanh(c) * o
    return h, c


if __name__ == "__main__":
    key = jax.random.PRNGKey(0)
    ks = jax.random.split(key, 8)

    # Shapes consistent with the module: N graph nodes, F input features, H hidden.
    N, F, H = 256, 16, 64

    X = jax.random.normal(ks[0], (N, F), dtype=jnp.float32)
    raw = jax.random.uniform(ks[1], (N, N), dtype=jnp.float32)
    adj = (raw + raw.T) * 0.5 + jnp.eye(N, dtype=jnp.float32)
    A = adj / jnp.sum(adj, axis=1, keepdims=True)        # row-normalized adjacency
    h_prev = jax.random.normal(ks[2], (N, H), dtype=jnp.float32)
    c_prev = jax.random.normal(ks[3], (N, H), dtype=jnp.float32)
    scale = 0.1
    WU = scale * jax.random.normal(ks[4], (4, F, H), dtype=jnp.float32)
    WW = scale * jax.random.normal(ks[5], (4, H, H), dtype=jnp.float32)
    WV = scale * jax.random.normal(ks[6], (3, H, H), dtype=jnp.float32)
    B = jnp.ones((4, N, H), dtype=jnp.float32)            # torch.nn.init.ones_

    h_ref, c_ref = lstm_gnn_cell_ref(X, A, h_prev, c_prev, WU, WW, WV, B)

    # 1) f32 operand path, explicit 128-multiple tiles -> real 2x2 (row x K) grid.
    h1, c1 = lstm_gnn_cell(X, A, h_prev, c_prev, WU, WW, WV, B,
                           tm=128, tk=128, matmul_dtype=jnp.float32)
    jax.block_until_ready((h1, c1))
    np.testing.assert_allclose(np.asarray(h1), np.asarray(h_ref), rtol=1e-4, atol=1e-4)
    np.testing.assert_allclose(np.asarray(c1), np.asarray(c_ref), rtol=1e-4, atol=1e-4)

    # 2) Default fast path: bf16 operands (f32 accumulation), auto tiles, resident ZW.
    h2, c2 = lstm_gnn_cell(X, A, h_prev, c_prev, WU, WW, WV, B)
    jax.block_until_ready((h2, c2))
    np.testing.assert_allclose(np.asarray(h2), np.asarray(h_ref), rtol=2e-2, atol=2e-2)
    np.testing.assert_allclose(np.asarray(c2), np.asarray(c_ref), rtol=2e-2, atol=2e-2)

    # 3) Non-128-multiple N and H exercise the zero-padding path (f32 for a tight check).
    N2, F2, H2 = 200, 12, 48
    X2 = jax.random.normal(ks[7], (N2, F2), dtype=jnp.float32)
    raw2 = jax.random.uniform(ks[1], (N2, N2), dtype=jnp.float32)
    adj2 = (raw2 + raw2.T) * 0.5 + jnp.eye(N2, dtype=jnp.float32)
    A2 = adj2 / jnp.sum(adj2, axis=1, keepdims=True)
    h_prev2 = jax.random.normal(ks[2], (N2, H2), dtype=jnp.float32)
    c_prev2 = jax.random.normal(ks[3], (N2, H2), dtype=jnp.float32)
    WU2 = scale * jax.random.normal(ks[4], (4, F2, H2), dtype=jnp.float32)
    WW2 = scale * jax.random.normal(ks[5], (4, H2, H2), dtype=jnp.float32)
    WV2 = scale * jax.random.normal(ks[6], (3, H2, H2), dtype=jnp.float32)
    B2 = jnp.ones((4, N2, H2), dtype=jnp.float32)

    h_ref2, c_ref2 = lstm_gnn_cell_ref(X2, A2, h_prev2, c_prev2, WU2, WW2, WV2, B2)
    h3, c3 = lstm_gnn_cell(X2, A2, h_prev2, c_prev2, WU2, WW2, WV2, B2,
                           matmul_dtype=jnp.float32)
    jax.block_until_ready((h3, c3))
    np.testing.assert_allclose(np.asarray(h3), np.asarray(h_ref2), rtol=1e-4, atol=1e-4)
    np.testing.assert_allclose(np.asarray(c3), np.asarray(c_ref2), rtol=1e-4, atol=1e-4)

    print("KERNEL_OK")
</pallas_src>

<mosaic_0001>
module attributes {stable_mosaic.version = 11 : i64} {
  func.func @_lstm_gnn_cell_kernel(%arg0: i32, %arg1: i32, %arg2: memref<128x128xf32, #tpu.memory_space<vmem>>, %arg3: memref<256x256xf32, #tpu.memory_space<vmem>>, %arg4: memref<128x256xf32, #tpu.memory_space<vmem>>, %arg5: memref<128x64xf32, #tpu.memory_space<vmem>>, %arg6: memref<128x128xf32, #tpu.memory_space<vmem>>, %arg7: memref<128x256xf32, #tpu.memory_space<vmem>>) attributes {dimension_semantics = [#tpu.dimension_semantics<parallel>, #tpu.dimension_semantics<arbitrary>], iteration_bounds = array<i64: 2, 2>, scalar_prefetch = 0 : i64, scratch_operands = 1 : i64, tpu.core_type = #tpu.core_type<tc>, window_params = [{transform_indices = @transform_0, window_bounds = array<i64: 128, 128>}, {pipeline_mode = #tpu.pipeline_mode<synchronous>, transform_indices = @transform_1, window_bounds = array<i64: 256, 256>}, {transform_indices = @transform_2, window_bounds = array<i64: 128, 256>}, {transform_indices = @transform_3, window_bounds = array<i64: 128, 64>}, {transform_indices = @transform_4, window_bounds = array<i64: 128, 128>}]} {
    %c0_i32 = arith.constant 0 : i32
    %0 = arith.cmpi eq, %arg1, %c0_i32 : i32
    %1 = arith.extui %0 : i1 to i32
    %c0_i32_0 = arith.constant 0 : i32
    %2 = arith.cmpi ne, %1, %c0_i32_0 : i32
    scf.if %2 {
      %cst_8 = arith.constant 0.000000e+00 : f32
      %15 = vector.broadcast %cst_8 : f32 to vector<128x256xf32>
      %c0_9 = arith.constant 0 : index
      %c0_10 = arith.constant 0 : index
      %16 = vector.load %arg7[%c0_9, %c0_10] : memref<128x256xf32, #tpu.memory_space<vmem>>, vector<128x256xf32>
      tpu.vector_store %arg7[%c0_9, %c0_10], %15 {strides = array<i32>} : memref<128x256xf32, #tpu.memory_space<vmem>>, vector<128x256xf32>,
    } else {
    }
    %c128_i32 = arith.constant 128 : i32
    %3 = arith.muli %arg1, %c128_i32 : i32
    %4 = tpu.assume_multiple %3, 128 : i32
    %5 = arith.index_cast %4 : i32 to index
    %c0 = arith.constant 0 : index
    %6 = vector.load %arg3[%5, %c0] : memref<256x256xf32, #tpu.memory_space<vmem>>, vector<128x256xf32>
    %c0_1 = arith.constant 0 : index
    %c0_2 = arith.constant 0 : index
    %7 = vector.load %arg7[%c0_1, %c0_2] : memref<128x256xf32, #tpu.memory_space<vmem>>, vector<128x256xf32>
    %c0_3 = arith.constant 0 : index
    %c0_4 = arith.constant 0 : index
    %8 = vector.load %arg2[%c0_3, %c0_4] : memref<128x128xf32, #tpu.memory_space<vmem>>, vector<128x128xf32>
    %cst = arith.constant dense<0.000000e+00> : vector<128x256xf32>
    %9 = tpu.matmul %8, %6, %cst {dimension_numbers = #tpu.dot_dimension_numbers<[1], [0], [0], [1], [0, 0, 1, 1], [], []>} : vector<128x128xf32>, vector<128x256xf32>, vector<128x256xf32> -> vector<128x256xf32>
    %10 = arith.addf %7, %9 : vector<128x256xf32>
    %c0_5 = arith.constant 0 : index
    %c0_6 = arith.constant 0 : index
    %11 = vector.load %arg7[%c0_5, %c0_6] : memref<128x256xf32, #tpu.memory_space<vmem>>, vector<128x256xf32>
    tpu.vector_store %arg7[%c0_5, %c0_6], %10 {strides = array<i32>} : memref<128x256xf32, #tpu.memory_space<vmem>>, vector<128x256xf32>,
    %c1_i32 = arith.constant 1 : i32
    %12 = arith.cmpi eq, %arg1, %c1_i32 : i32
    %13 = arith.extui %12 : i1 to i32
    %c0_i32_7 = arith.constant 0 : i32
    %14 = arith.cmpi ne, %13, %c0_i32_7 : i32
    scf.if %14 {
      %c0_8 = arith.constant 0 : index
      %c0_9 = arith.constant 0 : index
      %15 = vector.load %arg7[%c0_8, %c0_9] : memref<128x256xf32, #tpu.memory_space<vmem>>, vector<128x256xf32>
      %c0_10 = arith.constant 0 : index
      %c0_11 = arith.constant 0 : index
      %16 = vector.load %arg4[%c0_10, %c0_11] : memref<128x256xf32, #tpu.memory_space<vmem>>, vector<128x256xf32>
      %17 = arith.addf %15, %16 : vector<128x256xf32>
      %18 = vector.extract_strided_slice %17 {offsets = [0, 0], sizes = [128, 64], strides = [1, 1]} : vector<128x256xf32> to vector<128x64xf32>
      %19 = arith.negf %18 : vector<128x64xf32>
      %20 = math.exp %19 : vector<128x64xf32>
      %cst_12 = arith.constant 1.000000e+00 : f32
      %21 = vector.broadcast %cst_12 : f32 to vector<128x64xf32>
      %22 = arith.addf %21, %20 : vector<128x64xf32>
      %23 = arith.divf %21, %22 : vector<128x64xf32>
      %24 = vector.extract_strided_slice %17 {offsets = [0, 64], sizes = [128, 64], strides = [1, 1]} : vector<128x256xf32> to vector<128x64xf32>
      %25 = arith.negf %24 : vector<128x64xf32>
      %26 = math.exp %25 : vector<128x64xf32>
      %cst_13 = arith.constant 1.000000e+00 : f32
      %27 = vector.broadcast %cst_13 : f32 to vector<128x64xf32>
      %28 = arith.addf %27, %26 : vector<128x64xf32>
      %29 = arith.divf %27, %28 : vector<128x64xf32>
      %30 = vector.extract_strided_slice %17 {offsets = [0, 128], sizes = [128, 64], strides = [1, 1]} : vector<128x256xf32> to vector<128x64xf32>
      %31 = arith.negf %30 : vector<128x64xf32>
      %32 = math.exp %31 : vector<128x64xf32>
      %cst_14 = arith.constant 1.000000e+00 : f32
      %33 = vector.broadcast %cst_14 : f32 to vector<128x64xf32>
      %34 = arith.addf %33, %32 : vector<128x64xf32>
      %35 = arith.divf %33, %34 : vector<128x64xf32>
      %36 = vector.extract_strided_slice %17 {offsets = [0, 192], sizes = [128, 64], strides = [1, 1]} : vector<128x256xf32> to vector<128x64xf32>
      %37 = math.tanh %36 : vector<128x64xf32>
      %38 = math.tanh %37 : vector<128x64xf32>
      %c0_15 = arith.constant 0 : index
      %c0_16 = arith.constant 0 : index
      %39 = vector.load %arg5[%c0_15, %c0_16] : memref<128x64xf32, #tpu.memory_space<vmem>>, vector<128x64xf32>
      %40 = arith.mulf %29, %39 : vector<128x64xf32>
      %41 = arith.mulf %23, %38 : vector<128x64xf32>
      %42 = arith.addf %40, %41 : vector<128x64xf32>
      %43 = arith.negf %42 : vector<128x64xf32>
      %44 = math.exp %43 : vector<128x64xf32>
      %cst_17 = arith.constant 1.000000e+00 : f32
      %45 = vector.broadcast %cst_17 : f32 to vector<128x64xf32>
      %46 = arith.addf %45, %44 : vector<128x64xf32>
      %47 = arith.divf %45, %46 : vector<128x64xf32>
      %48 = math.tanh %47 : vector<128x64xf32>
      %49 = arith.mulf %48, %35 : vector<128x64xf32>
      %50 = tpu.concatenate %49, %47 in 1 : vector<128x64xf32>, vector<128x64xf32> -> vector<128x128xf32>
      %c0_18 = arith.constant 0 : index
      %c0_19 = arith.constant 0 : index
      %51 = vector.load %arg6[%c0_18, %c0_19] : memref<128x128xf32, #tpu.memory_space<vmem>>, vector<128x128xf32>
      tpu.vector_store %arg6[%c0_18, %c0_19], %50 {strides = array<i32>} : memref<128x128xf32, #tpu.memory_space<vmem>>, vector<128x128xf32>,
    } else {
    }
    return
  }
  func.func @transform_0(%arg0: i32, %arg1: i32) -> (i32, i32) {
    %c0_i32 = arith.constant 0 : i32
    return %arg0, %arg1 : i32, i32
  }
  func.func @transform_1(%arg0: i32, %arg1: i32) -> (i32, i32) {
    %c0_i32 = arith.constant 0 : i32
    %c0_i32_0 = arith.constant 0 : i32
    %c0_i32_1 = arith.constant 0 : i32
    return %c0_i32, %c0_i32_0 : i32, i32
  }
  func.func @transform_2(%arg0: i32, %arg1: i32) -> (i32, i32) {
    %c0_i32 = arith.constant 0 : i32
    %c0_i32_0 = arith.constant 0 : i32
    return %arg0, %c0_i32 : i32, i32
  }
  func.func @transform_3(%arg0: i32, %arg1: i32) -> (i32, i32) {
    %c0_i32 = arith.constant 0 : i32
    %c0_i32_0 = arith.constant 0 : i32
    return %arg0, %c0_i32 : i32, i32
  }
  func.func @transform_4(%arg0: i32, %arg1: i32) -> (i32, i32) {
    %c0_i32 = arith.constant 0 : i32
    %c0_i32_0 = arith.constant 0 : i32
    return %arg0, %c0_i32 : i32, i32
  }
}

</mosaic_0001>

<llo_original>
// kernel: tpu_custom_call.1
$region0: #{tpu_custom_call.1}
  #allocation0 [shape = 'u32[]', space=smem, size = 0x4, offset = 0x4, fixed_abs, tag = 'smem constant byte address 0x4 - core index']
  #allocation1 [shape = 'u32[72,128]{1,0:T(1,128)}', space=vmem, size = 0x9000, scoped, tag = 'internal scratch']
  #allocation2 [shape = 'f32[128,256]{1,0:T(8,128)}', space=vmem, size = 0x20000, scoped, tag = 'scratch operand']
  %s0 = inlined_call_operand.hbm [shape: f32[256,256], index: 0, kind: input, shape index: {}]
  %s1 = inlined_call_operand.hbm [shape: f32[256,256], index: 1, kind: input, shape index: {}]
  %s2 = inlined_call_operand.hbm [shape: f32[256,256], index: 2, kind: input, shape index: {}]
  %s3 = inlined_call_operand.vmem [shape: f32[256,64], index: 3, kind: input, shape index: {}]
  %s4 = inlined_call_operand.hbm [shape: f32[256,128], index: 4, kind: output, shape index: {}]
  %s5 = sld [smem:[#allocation0]]
  $region69: #{tpu_custom_call.1} parent=0
    _
  %s7 = ssub.s32 1, %s5
  %s8 = scalar_select 0, %s7, %s5
  $region1: #{tpu_custom_call.1} parent=0
    #allocation3 [shape = 'u8[131072]{0}', space=vmem, size = 0x20000, scoped, tag = 'input window, operand 0']
    #allocation4 [shape = 's32[2]{0}', space=sflag, size = 0x8, scoped, tag = 'scoped memory for tpu_custom_call.1']
    #allocation5 [shape = 's32[2]{0}', space=sflag, size = 0x8, scoped, tag = 'scoped memory for tpu_custom_call.1']
    #allocation6 [shape = 'u8[262144]{0}', space=vmem, size = 0x40000, scoped, tag = 'input window, operand 1, single buffered']
    #allocation7 [shape = 's32[1]{0}', space=sflag, size = 0x4, scoped, tag = 'scoped memory for tpu_custom_call.1']
    #allocation8 [shape = 'u8[262144]{0}', space=vmem, size = 0x40000, scoped, tag = 'input window, operand 2']
    #allocation9 [shape = 'u8[131072]{0}', space=vmem, size = 0x20000, scoped, tag = 'output window, operand 0']
    %9 = vsyncpa [#allocation4], 0
    %s10 = scalar_lea.sflag [#allocation4], 1
    %11 = vsyncpa %s10, 0
    %12 = vsyncpa [#allocation7], 0
    %13 = vsyncpa [#allocation5], 0
    %s14 = scalar_lea.sflag [#allocation5], 1
    %15 = vsyncpa %s14, 0
    loop: start=0, step=1, limit=6
    $region2: #{tpu_custom_call.1} parent=1 // loop_pre_header
      _
    $region3: #{tpu_custom_call.1} parent=1 // loop_header
      %s17 = sphi 0, %s21
      %p18 = scmp.ge.s32.totalorder %s17, 6
      %s24 = sphi 0, %s36
      %s25 = sphi 0, %s32
      %s26 = sphi 0, %s24
      %s27 = sphi 0, %s25
      %s28 = sphi 0, %s26
      %s29 = sphi 0, %s27
      %s41 = sphi 0, %s43
      %s44 = sphi 0, %s41
      %s45 = sphi 0, %s44
      %s61 = sphi 0, %s45
      %s65 = sphi 0, %s65
      %s67 = sphi 0, %s65
      %s68 = sphi 0, %s67
      %s82 = sphi 0, %s68
      %s88 = sphi 0, %s90
      %s91 = sphi 0, %s88
      %s92 = sphi 0, %s91
      %s108 = sphi 0, %s92
      %s114 = sphi 0, %s116
      %s117 = sphi 0, %s114
      %s118 = sphi 0, %s117
      %s134 = sphi 0, %s118
      %s140 = sphi 0, %s142
      %s143 = sphi 0, %s140
      %s144 = sphi 0, %s143
      %s160 = sphi 0, %s144
    $region4: #{tpu_custom_call.1} parent=1 // loop_header_branch
      %20 = sbr.rel (%p18) target = $region8
    $region5: #{tpu_custom_call.1} parent=1 // loop_body
      %s22 = ssub.s32 %s17, 1
      %s23 = ssub.s32 %s17, 2
      %s30 = sadd.s32 1, %s25
      %p31 = scmp.ge.s32.totalorder %s30, 2
      %s32 = scalar_select %p31, 0, %s30
      %s33 = sadd.s32 1, %s24
      %s34 = scalar_select %p31, %s33, %s24
      %p35 = scmp.ge.s32.totalorder %s34, 2
      %s36 = scalar_select %p35, 0, %s34
      %s37 = ssub.s32 %s24, %s36
      %s38 = ssub.s32 %s25, %s32
      %s39 = sor.u32 %s37, %s38
      %p40 = scmp.eq.s32.totalorder %s39, 0
      %s42 = sadd.s32 %s41, 1
      %s43 = scalar_select %p40, %s41, %s42
      %p46 = pneg %p40
      %p47 = scmp.eq.s32.totalorder %s17, 3
      %p48 = por %p46, %p47
      %p49 = scmp.ne.s32.totalorder %s41, %s44
      %p50 = scmp.eq.s32.totalorder %s17, 0
      %p51 = por %p49, %p50
      %p52 = scmp.ne.s32.totalorder %s41, %s44
      %p53 = scmp.eq.s32.totalorder %s22, 3
      %p54 = por %p52, %p53
      %p55 = scmp.ne.s32.totalorder %s44, %s45
      %p56 = scmp.eq.s32.totalorder %s22, 0
      %p57 = por %p55, %p56
      %p58 = scmp.ne.s32.totalorder %s44, %s45
      %p59 = scmp.eq.s32.totalorder %s23, 3
      %p60 = por %p58, %p59
      %p62 = scmp.ne.s32.totalorder %s45, %s61
      %p63 = scmp.eq.s32.totalorder %s23, 0
      %p64 = por %p62, %p63
      %s66 = sadd.s32 %s65, 1
      %p69 = scmp.eq.s32.totalorder %s17, 3
      %p70 = scmp.ne.s32.totalorder %s65, %s67
      %p71 = scmp.eq.s32.totalorder %s17, 0
      %p72 = por %p70, %p71
      %p73 = scmp.ne.s32.totalorder %s65, %s67
      %p74 = scmp.eq.s32.totalorder %s22, 3
      %p75 = por %p73, %p74
      %p76 = scmp.ne.s32.totalorder %s67, %s68
      %p77 = scmp.eq.s32.totalorder %s22, 0
      %p78 = por %p76, %p77
      %p79 = scmp.ne.s32.totalorder %s67, %s68
      %p80 = scmp.eq.s32.totalorder %s23, 3
      %p81 = por %p79, %p80
      %p83 = scmp.ne.s32.totalorder %s68, %s82
      %p84 = scmp.eq.s32.totalorder %s23, 0
      %p85 = por %p83, %p84
      %s86 = ssub.s32 %s24, %s36
      %p87 = scmp.eq.s32.totalorder %s86, 0
      %s89 = sadd.s32 %s88, 1
      %s90 = scalar_select %p87, %s88, %s89
      %p93 = pneg %p87
      %p94 = scmp.eq.s32.totalorder %s17, 3
      %p95 = por %p93, %p94
      %p96 = scmp.ne.s32.totalorder %s88, %s91
      %p97 = scmp.eq.s32.totalorder %s17, 0
      %p98 = por %p96, %p97
      %p99 = scmp.ne.s32.totalorder %s88, %s91
      %p100 = scmp.eq.s32.totalorder %s22, 3
      %p101 = por %p99, %p100
      %p102 = scmp.ne.s32.totalorder %s91, %s92
      %p103 = scmp.eq.s32.totalorder %s22, 0
      %p104 = por %p102, %p103
      %p105 = scmp.ne.s32.totalorder %s91, %s92
      %p106 = scmp.eq.s32.totalorder %s23, 3
      %p107 = por %p105, %p106
      %p109 = scmp.ne.s32.totalorder %s92, %s108
      %p110 = scmp.eq.s32.totalorder %s23, 0
      %p111 = por %p109, %p110
      %s112 = ssub.s32 %s24, %s36
      %p113 = scmp.eq.s32.totalorder %s112, 0
      %s115 = sadd.s32 %s114, 1
      %s116 = scalar_select %p113, %s114, %s115
      %p119 = pneg %p113
      %p120 = scmp.eq.s32.totalorder %s17, 3
      %p121 = por %p119, %p120
      %p122 = scmp.ne.s32.totalorder %s114, %s117
      %p123 = scmp.eq.s32.totalorder %s17, 0
      %p124 = por %p122, %p123
      %p125 = scmp.ne.s32.totalorder %s114, %s117
      %p126 = scmp.eq.s32.totalorder %s22, 3
      %p127 = por %p125, %p126
      %p128 = scmp.ne.s32.totalorder %s117, %s118
      %p129 = scmp.eq.s32.totalorder %s22, 0
      %p130 = por %p128, %p129
      %p131 = scmp.ne.s32.totalorder %s117, %s118
      %p132 = scmp.eq.s32.totalorder %s23, 3
      %p133 = por %p131, %p132
      %p135 = scmp.ne.s32.totalorder %s118, %s134
      %p136 = scmp.eq.s32.totalorder %s23, 0
      %p137 = por %p135, %p136
      %s138 = ssub.s32 %s24, %s36
      %p139 = scmp.eq.s32.totalorder %s138, 0
      %s141 = sadd.s32 %s140, 1
      %s142 = scalar_select %p139, %s140, %s141
      %p145 = pneg %p139
      %p146 = scmp.eq.s32.totalorder %s17, 3
      %p147 = por %p145, %p146
      %p148 = scmp.ne.s32.totalorder %s140, %s143
      %p149 = scmp.eq.s32.totalorder %s17, 0
      %p150 = por %p148, %p149
      %p151 = scmp.ne.s32.totalorder %s140, %s143
      %p152 = scmp.eq.s32.totalorder %s22, 3
      %p153 = por %p151, %p152
      %p154 = scmp.ne.s32.totalorder %s143, %s144
      %p155 = scmp.eq.s32.totalorder %s22, 0
      %p156 = por %p154, %p155
      %p157 = scmp.ne.s32.totalorder %s143, %s144
      %p158 = scmp.eq.s32.totalorder %s23, 3
      %p159 = por %p157, %p158
      %p161 = scmp.ne.s32.totalorder %s144, %s160
      %p162 = scmp.eq.s32.totalorder %s23, 0
      %p163 = por %p161, %p162
      %p164 = scmp.le.s32.totalorder 1, %s17
      %p165 = scmp.lt.s32.totalorder %s17, 5
      %p166 = pnand %p164, %p165
      %p167 = pneg %p166
      // Predicated region
      $region9: #{tpu_custom_call.1} parent=5 // pred_check
        _
      $region10: #{tpu_custom_call.1} parent=5 // pred_check_branch
        %169 = sbr.rel (%p166) target = $region12
      $region11: #{tpu_custom_call.1} parent=5 // pred_region
        %s170 = ssub.s32 %s17, 1
        // Predicated region
        $region13: #{tpu_custom_call.1} parent=11 // pred_check
          %p171 = pneg %p78
        $region14: #{tpu_custom_call.1} parent=11 // pred_check_branch
          %173 = sbr.rel (%p171) target = $region16
        $region15: #{tpu_custom_call.1} parent=11 // pred_region
          %175 = vsyncadd [#allocation7], 0
          %s176 = sshll.u32 %s1, 4
          %s177 = int_to_ptr.hbm [resolvable:$true] %s176
          %s178 = sshll.u32 [#allocation6], 4
          %s179 = int_to_ptr.vmem [resolvable:$true] %s178
          %184 = dma.hbm_to_vmem [thread:$0]  %s177, 8192, %s179, [#allocation7], 256, 256, 16
        $region16: #{tpu_custom_call.1} parent=11 // pred_fallthru
          _
      $region12: #{tpu_custom_call.1} parent=5 // pred_fallthru
        _
      %p185 = scmp.lt.s32.totalorder %s17, 4
      // Predicated region
      $region17: #{tpu_custom_call.1} parent=5 // pred_check
        %p186 = pneg %p185
      $region18: #{tpu_custom_call.1} parent=5 // pred_check_branch
        %188 = sbr.rel (%p186) target = $region20
      $region19: #{tpu_custom_call.1} parent=5 // pred_region
        // Predicated region
        $region21: #{tpu_custom_call.1} parent=19 // pred_check
          %p189 = pneg %p51
        $region22: #{tpu_custom_call.1} parent=19 // pred_check_branch
          %191 = sbr.rel (%p189) target = $region24
        $region23: #{tpu_custom_call.1} parent=19 // pred_region
          %s192 = sand.u32 %s17, 1
          %s193 = scalar_lea.sflag [#allocation4], %s192
          %s194 = sand.u32 %s41, 1
          %s195 = smul.addr %s194, 128
          %s196 = scalar_lea.vmem [#allocation3], %s195
          %s197 = smul.u32 16, %s24
          %199 = vsyncadd %s193, 0
          %s200 = smul.addr %s197, 2
          %s201 = sadd.s32 %s25, %s200
          %s202 = smul.addr %s201, 8
          %s203 = scalar_lea.hbm %s0, %s202
          %s204 = sshll.u32 %s203, 4
          %s205 = int_to_ptr.hbm [resolvable:$true] %s204
          %s206 = sshll.u32 %s196, 4
          %s207 = int_to_ptr.vmem [resolvable:$true] %s206
          %212 = dma.hbm_to_vmem [thread:$0]  %s205, 2048, %s207, %s193, 256, 128, 8
        $region24: #{tpu_custom_call.1} parent=19 // pred_fallthru
          _
        // Predicated region
        $region25: #{tpu_custom_call.1} parent=19 // pred_check
          %p213 = pneg %p98
        $region26: #{tpu_custom_call.1} parent=19 // pred_check_branch
          %215 = sbr.rel (%p213) target = $region28
        $region27: #{tpu_custom_call.1} parent=19 // pred_region
          %s216 = sand.u32 %s17, 1
          %s217 = scalar_lea.sflag [#allocation4], %s216
          %s218 = sand.u32 %s88, 1
          %s219 = smul.addr %s218, 256
          %s220 = scalar_lea.vmem [#allocation8], %s219
          %s221 = smul.u32 16, %s24
          %223 = vsyncadd %s217, 0
          %s224 = smul.addr %s221, 2
          %s225 = smul.addr %s224, 8
          %s226 = scalar_lea.hbm %s2, %s225
          %s227 = sshll.u32 %s226, 4
          %s228 = int_to_ptr.hbm [resolvable:$true] %s227
          %s229 = sshll.u32 %s220, 4
          %s230 = int_to_ptr.vmem [resolvable:$true] %s229
          %235 = dma.hbm_to_vmem [thread:$0]  %s228, 4096, %s230, %s217, 256, 256, 16
        $region28: #{tpu_custom_call.1} parent=19 // pred_fallthru
          _
        // Predicated region
        $region29: #{tpu_custom_call.1} parent=19 // pred_check
          %p236 = pneg %p124
        $region30: #{tpu_custom_call.1} parent=19 // pred_check_branch
          %238 = sbr.rel (%p236) target = $region32
        $region31: #{tpu_custom_call.1} parent=19 // pred_region
          %s239 = smul.u32 16, %s24
          %p240 = scmp.lt.s32.totalorder %s239, 31
          %s241 = scalar_select %p240, %s239, 31
          %s242 = smul.addr %s241, 8
          %s243 = scalar_lea.vmem %s3, %s242
          %s244 = smul.u32 16, %s24
        $region32: #{tpu_custom_call.1} parent=19 // pred_fallthru
          _
      $region20: #{tpu_custom_call.1} parent=5 // pred_fallthru
        _
      %p245 = scmp.le.s32.totalorder 1, %s17
      %p246 = scmp.lt.s32.totalorder %s17, 5
      %p247 = pnand %p245, %p246
      %p248 = pneg %p247
      // Predicated region
      $region33: #{tpu_custom_call.1} parent=5 // pred_check
        _
      $region34: #{tpu_custom_call.1} parent=5 // pred_check_branch
        %250 = sbr.rel (%p247) target = $region36
      $region35: #{tpu_custom_call.1} parent=5 // pred_region
        %s251 = ssub.s32 %s17, 1
        %s252 = sand.u32 %s22, 1
        %s253 = scalar_lea.sflag [#allocation4], %s252
        %s254 = sand.u32 %s44, 1
        %s255 = smul.addr %s254, 128
        %s256 = scalar_lea.vmem [#allocation3], %s255
        // Predicated region
        $region37: #{tpu_custom_call.1} parent=35 // pred_check
          %p257 = pneg %p57
        $region38: #{tpu_custom_call.1} parent=35 // pred_check_branch
          %259 = sbr.rel (%p257) target = $region40
        $region39: #{tpu_custom_call.1} parent=35 // pred_region
          %261 = dma.done %s253, 2048
        $region40: #{tpu_custom_call.1} parent=35 // pred_fallthru
          _
        // Predicated region
        $region41: #{tpu_custom_call.1} parent=35 // pred_check
          %p262 = pneg %p78
        $region42: #{tpu_custom_call.1} parent=35 // pred_check_branch
          %264 = sbr.rel (%p262) target = $region44
        $region43: #{tpu_custom_call.1} parent=35 // pred_region
          %266 = dma.done [#allocation7], 8192
        $region44: #{tpu_custom_call.1} parent=35 // pred_fallthru
          _
        %s267 = sand.u32 %s22, 1
        %s268 = scalar_lea.sflag [#allocation4], %s267
        %s269 = sand.u32 %s91, 1
        %s270 = smul.addr %s269, 256
        %s271 = scalar_lea.vmem [#allocation8], %s270
        // Predicated region
        $region45: #{tpu_custom_call.1} parent=35 // pred_check
          %p272 = pneg %p104
        $region46: #{tpu_custom_call.1} parent=35 // pred_check_branch
          %274 = sbr.rel (%p272) target = $region48
        $region47: #{tpu_custom_call.1} parent=35 // pred_region
          %276 = dma.done %s268, 4096
        $region48: #{tpu_custom_call.1} parent=35 // pred_fallthru
          _
        %s277 = sand.u32 %s22, 1
        %s278 = scalar_lea.sflag [#allocation4], %s277
        %s279 = sand.u32 %s44, 1
        %s280 = smul.addr %s279, 128
        %s281 = scalar_lea.vmem [#allocation3], %s280
        %p282 = pneg %p57
        %p283 = pneg %p54
        %p284 = pneg %p78
        %p285 = pneg %p75
        %s286 = sand.u32 %s22, 1
        %s287 = scalar_lea.sflag [#allocation4], %s286
        %s288 = sand.u32 %s91, 1
        %s289 = smul.addr %s288, 256
        %s290 = scalar_lea.vmem [#allocation8], %s289
        %p291 = pneg %p104
        %p292 = pneg %p101
        %s293 = smul.u32 16, %s26
        %p294 = scmp.lt.s32.totalorder %s293, 31
        %s295 = scalar_select %p294, %s293, 31
        %s296 = smul.addr %s295, 8
        %s297 = scalar_lea.vmem %s3, %s296
        %p298 = pneg %p130
        %p299 = pneg %p127
        %p300 = pneg %p156
        %p301 = pneg %p153
        %s302 = sand.u32 %s143, 1
        %s303 = scalar_lea.sflag [#allocation5], %s302
        %s304 = sand.u32 %s143, 1
        %s305 = smul.addr %s304, 128
        %s306 = scalar_lea.vmem [#allocation9], %s305
        %s307 = smul.u32 16, %s26
        %s308 = smul.u32 16, %s26
        %s309 = smul.u32 16, %s26
        %p310 = scmp.lt.s32.totalorder %s309, 31
        %s311 = scalar_select %p310, %s309, 31
        %s312 = smul.addr %s311, 8
        %s313 = scalar_lea.vmem %s3, %s312
        %s314 = smul.u32 16, %s26
        %s315 = smul.u32 16, %s26
        %p316 = scmp.eq.s32.totalorder %s27, 0
        // Predicated region
        $region49: #{tpu_custom_call.1} parent=35 // pred_check
          %p317 = pneg %p316
        $region50: #{tpu_custom_call.1} parent=35 // pred_check_branch
          %319 = sbr.rel (%p317) target = $region52
        $region51: #{tpu_custom_call.1} parent=35 // pred_region
          %320 = vst [vmem:[#allocation2] sm:$0xff] 0.0
          %321 = vst [vmem:[#allocation2 + $0x8] sm:$0xff] 0.0
          %322 = vst [vmem:[#allocation2 + $0x10] sm:$0xff] 0.0
          %323 = vst [vmem:[#allocation2 + $0x18] sm:$0xff] 0.0
          %324 = vst [vmem:[#allocation2 + $0x20] sm:$0xff] 0.0
          %325 = vst [vmem:[#allocation2 + $0x28] sm:$0xff] 0.0
          %326 = vst [vmem:[#allocation2 + $0x30] sm:$0xff] 0.0
          %327 = vst [vmem:[#allocation2 + $0x38] sm:$0xff] 0.0
          %328 = vst [vmem:[#allocation2 + $0x40] sm:$0xff] 0.0
          %329 = vst [vmem:[#allocation2 + $0x48] sm:$0xff] 0.0
          %330 = vst [vmem:[#allocation2 + $0x50] sm:$0xff] 0.0
          %331 = vst [vmem:[#allocation2 + $0x58] sm:$0xff] 0.0
          %332 = vst [vmem:[#allocation2 + $0x60] sm:$0xff] 0.0
          %333 = vst [vmem:[#allocation2 + $0x68] sm:$0xff] 0.0
          %334 = vst [vmem:[#allocation2 + $0x70] sm:$0xff] 0.0
          %335 = vst [vmem:[#allocation2 + $0x78] sm:$0xff] 0.0
          %336 = vst [vmem:[#allocation2 + $0x80] sm:$0xff] 0.0
          %337 = vst [vmem:[#allocation2 + $0x88] sm:$0xff] 0.0
          %338 = vst [vmem:[#allocation2 + $0x90] sm:$0xff] 0.0
          %339 = vst [vmem:[#allocation2 + $0x98] sm:$0xff] 0.0
          %340 = vst [vmem:[#allocation2 + $0xa0] sm:$0xff] 0.0
          %341 = vst [vmem:[#allocation2 + $0xa8] sm:$0xff] 0.0
          %342 = vst [vmem:[#allocation2 + $0xb0] sm:$0xff] 0.0
          %343 = vst [vmem:[#allocation2 + $0xb8] sm:$0xff] 0.0
          %344 = vst [vmem:[#allocation2 + $0xc0] sm:$0xff] 0.0
          %345 = vst [vmem:[#allocation2 + $0xc8] sm:$0xff] 0.0
          %346 = vst [vmem:[#allocation2 + $0xd0] sm:$0xff] 0.0
          %347 = vst [vmem:[#allocation2 + $0xd8] sm:$0xff] 0.0
          %348 = vst [vmem:[#allocation2 + $0xe0] sm:$0xff] 0.0
          %349 = vst [vmem:[#allocation2 + $0xe8] sm:$0xff] 0.0
          %350 = vst [vmem:[#allocation2 + $0xf0] sm:$0xff] 0.0
          %351 = vst [vmem:[#allocation2 + $0xf8] sm:$0xff] 0.0
        $region52: #{tpu_custom_call.1} parent=35 // pred_fallthru
          _
        %s352 = smul.u32 %s27, 128
        %s353 = sshra.s32 %s352, 3
        %s354 = sand.u32 %s352, 7
        %s355 = smul.u32 %s353, 2
        %s356 = smul.addr %s355, 8
        %s357 = scalar_lea.vmem [#allocation6], %s356
        %v358 = vld [vmem:[%s357] sm:$0xff]
        %v359 = vld [vmem:[%s357 + $0x8] sm:$0xff]
        %v360 = vld [vmem:[%s357 + $0x10] sm:$0xff]
        %v361 = vld [vmem:[%s357 + $0x18] sm:$0xff]
        %v362 = vld [vmem:[%s357 + $0x20] sm:$0xff]
        %v363 = vld [vmem:[%s357 + $0x28] sm:$0xff]
        %v364 = vld [vmem:[%s357 + $0x30] sm:$0xff]
        %v365 = vld [vmem:[%s357 + $0x38] sm:$0xff]
        %v366 = vld [vmem:[%s357 + $0x40] sm:$0xff]
        %v367 = vld [vmem:[%s357 + $0x48] sm:$0xff]
        %v368 = vld [vmem:[%s357 + $0x50] sm:$0xff]
        %v369 = vld [vmem:[%s357 + $0x58] sm:$0xff]
        %v370 = vld [vmem:[%s357 + $0x60] sm:$0xff]
        %v371 = vld [vmem:[%s357 + $0x68] sm:$0xff]
        %v372 = vld [vmem:[%s357 + $0x70] sm:$0xff]
        %v373 = vld [vmem:[%s357 + $0x78] sm:$0xff]
        %v374 = vld [vmem:[%s357 + $0x80] sm:$0xff]
        %v375 = vld [vmem:[%s357 + $0x88] sm:$0xff]
        %v376 = vld [vmem:[%s357 + $0x90] sm:$0xff]
        %v377 = vld [vmem:[%s357 + $0x98] sm:$0xff]
        %v378 = vld [vmem:[%s357 + $0xa0] sm:$0xff]
        %v379 = vld [vmem:[%s357 + $0xa8] sm:$0xff]
        %v380 = vld [vmem:[%s357 + $0xb0] sm:$0xff]
        %v381 = vld [vmem:[%s357 + $0xb8] sm:$0xff]
        %v382 = vld [vmem:[%s357 + $0xc0] sm:$0xff]
        %v383 = vld [vmem:[%s357 + $0xc8] sm:$0xff]
        %v384 = vld [vmem:[%s357 + $0xd0] sm:$0xff]
        %v385 = vld [vmem:[%s357 + $0xd8] sm:$0xff]
        %v386 = vld [vmem:[%s357 + $0xe0] sm:$0xff]
        %v387 = vld [vmem:[%s357 + $0xe8] sm:$0xff]
        %v388 = vld [vmem:[%s357 + $0xf0] sm:$0xff]
        %v389 = vld [vmem:[%s357 + $0xf8] sm:$0xff]
        %v390 = vld [vmem:[#allocation2] sm:$0xff]
        %v391 = vld [vmem:[#allocation2 + $0x8] sm:$0xff]
        %v392 = vld [vmem:[#allocation2 + $0x10] sm:$0xff]
        %v393 = vld [vmem:[#allocation2 + $0x18] sm:$0xff]
        %v394 = vld [vmem:[#allocation2 + $0x20] sm:$0xff]
        %v395 = vld [vmem:[#allocation2 + $0x28] sm:$0xff]
        %v396 = vld [vmem:[#allocation2 + $0x30] sm:$0xff]
        %v397 = vld [vmem:[#allocation2 + $0x38] sm:$0xff]
        %v398 = vld [vmem:[#allocation2 + $0x40] sm:$0xff]
        %v399 = vld [vmem:[#allocation2 + $0x48] sm:$0xff]
        %v400 = vld [vmem:[#allocation2 + $0x50] sm:$0xff]
        %v401 = vld [vmem:[#allocation2 + $0x58] sm:$0xff]
        %v402 = vld [vmem:[#allocation2 + $0x60] sm:$0xff]
        %v403 = vld [vmem:[#allocation2 + $0x68] sm:$0xff]
        %v404 = vld [vmem:[#allocation2 + $0x70] sm:$0xff]
        %v405 = vld [vmem:[#allocation2 + $0x78] sm:$0xff]
        %v406 = vld [vmem:[#allocation2 + $0x80] sm:$0xff]
        %v407 = vld [vmem:[#allocation2 + $0x88] sm:$0xff]
        %v408 = vld [vmem:[#allocation2 + $0x90] sm:$0xff]
        %v409 = vld [vmem:[#allocation2 + $0x98] sm:$0xff]
        %v410 = vld [vmem:[#allocation2 + $0xa0] sm:$0xff]
        %v411 = vld [vmem:[#allocation2 + $0xa8] sm:$0xff]
        %v412 = vld [vmem:[#allocation2 + $0xb0] sm:$0xff]
        %v413 = vld [vmem:[#allocation2 + $0xb8] sm:$0xff]
        %v414 = vld [vmem:[#allocation2 + $0xc0] sm:$0xff]
        %v415 = vld [vmem:[#allocation2 + $0xc8] sm:$0xff]
        %v416 = vld [vmem:[#allocation2 + $0xd0] sm:$0xff]
        %v417 = vld [vmem:[#allocation2 + $0xd8] sm:$0xff]
        %v418 = vld [vmem:[#allocation2 + $0xe0] sm:$0xff]
        %v419 = vld [vmem:[#allocation2 + $0xe8] sm:$0xff]
        %v420 = vld [vmem:[#allocation2 + $0xf0] sm:$0xff]
        %v421 = vld [vmem:[#allocation2 + $0xf8] sm:$0xff]
        %v422 = vld [vmem:[%s256] sm:$0xff]
        %v423 = vld [vmem:[%s256 + $0x8] sm:$0xff]
        %v424 = vld [vmem:[%s256 + $0x10] sm:$0xff]
        %v425 = vld [vmem:[%s256 + $0x18] sm:$0xff]
        %v426 = vld [vmem:[%s256 + $0x20] sm:$0xff]
        %v427 = vld [vmem:[%s256 + $0x28] sm:$0xff]
        %v428 = vld [vmem:[%s256 + $0x30] sm:$0xff]
        %v429 = vld [vmem:[%s256 + $0x38] sm:$0xff]
        %v430 = vld [vmem:[%s256 + $0x40] sm:$0xff]
        %v431 = vld [vmem:[%s256 + $0x48] sm:$0xff]
        %v432 = vld [vmem:[%s256 + $0x50] sm:$0xff]
        %v433 = vld [vmem:[%s256 + $0x58] sm:$0xff]
        %v434 = vld [vmem:[%s256 + $0x60] sm:$0xff]
        %v435 = vld [vmem:[%s256 + $0x68] sm:$0xff]
        %v436 = vld [vmem:[%s256 + $0x70] sm:$0xff]
        %v437 = vld [vmem:[%s256 + $0x78] sm:$0xff]
        %438 = vmatpush.msra.mxu0 %v388
        %439 = vmatpush.msra.mxu0 %v386
        %440 = vmatpush.msra.mxu0 %v384
        %441 = vmatpush.msra.mxu0 %v382
        %442 = vmatpush.msra.mxu0 %v380
        %443 = vmatpush.msra.mxu0 %v378
        %444 = vmatpush.msra.mxu0 %v376
        %445 = vmatpush.msra.mxu0 %v374
        %446 = vmatpush.msra.mxu0 %v372
        %447 = vmatpush.msra.mxu0 %v370
        %448 = vmatpush.msra.mxu0 %v368
        %449 = vmatpush.msra.mxu0 %v366
        %450 = vmatpush.msra.mxu0 %v364
        %451 = vmatpush.msra.mxu0 %v362
        %452 = vmatpush.msra.mxu0 %v360
        %453 = vmatpush.msra.mxu0 %v358
        %454 = vmatmul.f32.gmra.mxu0 %v422
        %v455 = vpop.f32.mrf.mxu0
        %v456 = vadd.f32 0.0, %v455
        %457 = vmatmul.f32.gmra.mxu0 %v423
        %v458 = vpop.f32.mrf.mxu0
        %v459 = vadd.f32 0.0, %v458
        %460 = vmatmul.f32.gmra.mxu0 %v424
        %v461 = vpop.f32.mrf.mxu0
        %v462 = vadd.f32 0.0, %v461
        %463 = vmatmul.f32.gmra.mxu0 %v425
        %v464 = vpop.f32.mrf.mxu0
        %v465 = vadd.f32 0.0, %v464
        %466 = vmatmul.f32.gmra.mxu0 %v426
        %v467 = vpop.f32.mrf.mxu0
        %v468 = vadd.f32 0.0, %v467
        %469 = vmatmul.f32.gmra.mxu0 %v427
        %v470 = vpop.f32.mrf.mxu0
        %v471 = vadd.f32 0.0, %v470
        %472 = vmatmul.f32.gmra.mxu0 %v428
        %v473 = vpop.f32.mrf.mxu0
        %v474 = vadd.f32 0.0, %v473
        %475 = vmatmul.f32.gmra.mxu0 %v429
        %v476 = vpop.f32.mrf.mxu0
        %v477 = vadd.f32 0.0, %v476
        %478 = vmatmul.f32.gmra.mxu0 %v430
        %v479 = vpop.f32.mrf.mxu0
        %v480 = vadd.f32 0.0, %v479
        %481 = vmatmul.f32.gmra.mxu0 %v431
        %v482 = vpop.f32.mrf.mxu0
        %v483 = vadd.f32 0.0, %v482
        %484 = vmatmul.f32.gmra.mxu0 %v432
        %v485 = vpop.f32.mrf.mxu0
        %v486 = vadd.f32 0.0, %v485
        %487 = vmatmul.f32.gmra.mxu0 %v433
        %v488 = vpop.f32.mrf.mxu0
        %v489 = vadd.f32 0.0, %v488
        %490 = vmatmul.f32.gmra.mxu0 %v434
        %v491 = vpop.f32.mrf.mxu0
        %v492 = vadd.f32 0.0, %v491
        %493 = vmatmul.f32.gmra.mxu0 %v435
        %v494 = vpop.f32.mrf.mxu0
        %v495 = vadd.f32 0.0, %v494
        %496 = vmatmul.f32.gmra.mxu0 %v436
        %v497 = vpop.f32.mrf.mxu0
        %v498 = vadd.f32 0.0, %v497
        %499 = vmatmul.f32.gmra.mxu0 %v437
        %v500 = vpop.f32.mrf.mxu0
        %v501 = vadd.f32 0.0, %v500
        %502 = vdwg.mxu0
        %503 = vmatpush.msra.mxu0 %v389
        %504 = vmatpush.msra.mxu0 %v387
        %505 = vmatpush.msra.mxu0 %v385
        %506 = vmatpush.msra.mxu0 %v383
        %507 = vmatpush.msra.mxu0 %v381
        %508 = vmatpush.msra.mxu0 %v379
        %509 = vmatpush.msra.mxu0 %v377
        %510 = vmatpush.msra.mxu0 %v375
        %511 = vmatpush.msra.mxu0 %v373
        %512 = vmatpush.msra.mxu0 %v371
        %513 = vmatpush.msra.mxu0 %v369
        %514 = vmatpush.msra.mxu0 %v367
        %515 = vmatpush.msra.mxu0 %v365
        %516 = vmatpush.msra.mxu0 %v363
        %517 = vmatpush.msra.mxu0 %v361
        %518 = vmatpush.msra.mxu0 %v359
        %519 = vmatmul.f32.gmra.mxu0 %v422
        %v520 = vpop.f32.mrf.mxu0
        %v521 = vadd.f32 0.0, %v520
        %522 = vmatmul.f32.gmra.mxu0 %v423
        %v523 = vpop.f32.mrf.mxu0
        %v524 = vadd.f32 0.0, %v523
        %525 = vmatmul.f32.gmra.mxu0 %v424
        %v526 = vpop.f32.mrf.mxu0
        %v527 = vadd.f32 0.0, %v526
        %528 = vmatmul.f32.gmra.mxu0 %v425
        %v529 = vpop.f32.mrf.mxu0
        %v530 = vadd.f32 0.0, %v529
        %531 = vmatmul.f32.gmra.mxu0 %v426
        %v532 = vpop.f32.mrf.mxu0
        %v533 = vadd.f32 0.0, %v532
        %534 = vmatmul.f32.gmra.mxu0 %v427
        %v535 = vpop.f32.mrf.mxu0
        %v536 = vadd.f32 0.0, %v535
        %537 = vmatmul.f32.gmra.mxu0 %v428
        %v538 = vpop.f32.mrf.mxu0
        %v539 = vadd.f32 0.0, %v538
        %540 = vmatmul.f32.gmra.mxu0 %v429
        %v541 = vpop.f32.mrf.mxu0
        %v542 = vadd.f32 0.0, %v541
        %543 = vmatmul.f32.gmra.mxu0 %v430
        %v544 = vpop.f32.mrf.mxu0
        %v545 = vadd.f32 0.0, %v544
        %546 = vmatmul.f32.gmra.mxu0 %v431
        %v547 = vpop.f32.mrf.mxu0
        %v548 = vadd.f32 0.0, %v547
        %549 = vmatmul.f32.gmra.mxu0 %v432
        %v550 = vpop.f32.mrf.mxu0
        %v551 = vadd.f32 0.0, %v550
        %552 = vmatmul.f32.gmra.mxu0 %v433
        %v553 = vpop.f32.mrf.mxu0
        %v554 = vadd.f32 0.0, %v553
        %555 = vmatmul.f32.gmra.mxu0 %v434
        %v556 = vpop.f32.mrf.mxu0
        %v557 = vadd.f32 0.0, %v556
        %558 = vmatmul.f32.gmra.mxu0 %v435
        %v559 = vpop.f32.mrf.mxu0
        %v560 = vadd.f32 0.0, %v559
        %561 = vmatmul.f32.gmra.mxu0 %v436
        %v562 = vpop.f32.mrf.mxu0
        %v563 = vadd.f32 0.0, %v562
        %564 = vmatmul.f32.gmra.mxu0 %v437
        %v565 = vpop.f32.mrf.mxu0
        %v566 = vadd.f32 0.0, %v565
        %567 = vdwg.mxu0
        %v568 = vadd.f32 %v390, %v456
        %v569 = vadd.f32 %v391, %v521
        %v570 = vadd.f32 %v392, %v459
        %v571 = vadd.f32 %v393, %v524
        %v572 = vadd.f32 %v394, %v462
        %v573 = vadd.f32 %v395, %v527
        %v574 = vadd.f32 %v396, %v465
        %v575 = vadd.f32 %v397, %v530
        %v576 = vadd.f32 %v398, %v468
        %v577 = vadd.f32 %v399, %v533
        %v578 = vadd.f32 %v400, %v471
        %v579 = vadd.f32 %v401, %v536
        %v580 = vadd.f32 %v402, %v474
        %v581 = vadd.f32 %v403, %v539
        %v582 = vadd.f32 %v404, %v477
        %v583 = vadd.f32 %v405, %v542
        %v584 = vadd.f32 %v406, %v480
        %v585 = vadd.f32 %v407, %v545
        %v586 = vadd.f32 %v408, %v483
        %v587 = vadd.f32 %v409, %v548
        %v588 = vadd.f32 %v410, %v486
        %v589 = vadd.f32 %v411, %v551
        %v590 = vadd.f32 %v412, %v489
        %v591 = vadd.f32 %v413, %v554
        %v592 = vadd.f32 %v414, %v492
        %v593 = vadd.f32 %v415, %v557
        %v594 = vadd.f32 %v416, %v495
        %v595 = vadd.f32 %v417, %v560
        %v596 = vadd.f32 %v418, %v498
        %v597 = vadd.f32 %v419, %v563
        %v598 = vadd.f32 %v420, %v501
        %v599 = vadd.f32 %v421, %v566
        %600 = vst [vmem:[#allocation2] sm:$0xff] %v568
        %601 = vst [vmem:[#allocation2 + $0x8] sm:$0xff] %v569
        %602 = vst [vmem:[#allocation2 + $0x10] sm:$0xff] %v570
        %603 = vst [vmem:[#allocation2 + $0x18] sm:$0xff] %v571
        %604 = vst [vmem:[#allocation2 + $0x20] sm:$0xff] %v572
        %605 = vst [vmem:[#allocation2 + $0x28] sm:$0xff] %v573
        %606 = vst [vmem:[#allocation2 + $0x30] sm:$0xff] %v574
        %607 = vst [vmem:[#allocation2 + $0x38] sm:$0xff] %v575
        %608 = vst [vmem:[#allocation2 + $0x40] sm:$0xff] %v576
        %609 = vst [vmem:[#allocation2 + $0x48] sm:$0xff] %v577
        %610 = vst [vmem:[#allocation2 + $0x50] sm:$0xff] %v578
        %611 = vst [vmem:[#allocation2 + $0x58] sm:$0xff] %v579
        %612 = vst [vmem:[#allocation2 + $0x60] sm:$0xff] %v580
        %613 = vst [vmem:[#allocation2 + $0x68] sm:$0xff] %v581
        %614 = vst [vmem:[#allocation2 + $0x70] sm:$0xff] %v582
        %615 = vst [vmem:[#allocation2 + $0x78] sm:$0xff] %v583
        %616 = vst [vmem:[#allocation2 + $0x80] sm:$0xff] %v584
        %617 = vst [vmem:[#allocation2 + $0x88] sm:$0xff] %v585
        %618 = vst [vmem:[#allocation2 + $0x90] sm:$0xff] %v586
        %619 = vst [vmem:[#allocation2 + $0x98] sm:$0xff] %v587
        %620 = vst [vmem:[#allocation2 + $0xa0] sm:$0xff] %v588
        %621 = vst [vmem:[#allocation2 + $0xa8] sm:$0xff] %v589
        %622 = vst [vmem:[#allocation2 + $0xb0] sm:$0xff] %v590
        %623 = vst [vmem:[#allocation2 + $0xb8] sm:$0xff] %v591
        %624 = vst [vmem:[#allocation2 + $0xc0] sm:$0xff] %v592
        %625 = vst [vmem:[#allocation2 + $0xc8] sm:$0xff] %v593
        %626 = vst [vmem:[#allocation2 + $0xd0] sm:$0xff] %v594
        %627 = vst [vmem:[#allocation2 + $0xd8] sm:$0xff] %v595
        %628 = vst [vmem:[#allocation2 + $0xe0] sm:$0xff] %v596
        %629 = vst [vmem:[#allocation2 + $0xe8] sm:$0xff] %v597
        %630 = vst [vmem:[#allocation2 + $0xf0] sm:$0xff] %v598
        %631 = vst [vmem:[#allocation2 + $0xf8] sm:$0xff] %v599
        %p632 = scmp.eq.s32.totalorder %s27, 1
        // Predicated region
        $region53: #{tpu_custom_call.1} parent=35 // pred_check
          %p633 = pneg %p632
        $region54: #{tpu_custom_call.1} parent=35 // pred_check_branch
          %635 = sbr.rel (%p633) target = $region56
        $region55: #{tpu_custom_call.1} parent=35 // pred_region
          %v636 = vld [vmem:[#allocation2] sm:$0xff]
          %v637 = vld [vmem:[#allocation2 + $0x8] sm:$0xff]
          %v638 = vld [vmem:[#allocation2 + $0x10] sm:$0xff]
          %v639 = vld [vmem:[#allocation2 + $0x18] sm:$0xff]
          %v640 = vld [vmem:[#allocation2 + $0x20] sm:$0xff]
          %v641 = vld [vmem:[#allocation2 + $0x28] sm:$0xff]
          %v642 = vld [vmem:[#allocation2 + $0x30] sm:$0xff]
          %v643 = vld [vmem:[#allocation2 + $0x38] sm:$0xff]
          %v644 = vld [vmem:[#allocation2 + $0x40] sm:$0xff]
          %v645 = vld [vmem:[#allocation2 + $0x48] sm:$0xff]
          %v646 = vld [vmem:[#allocation2 + $0x50] sm:$0xff]
          %v647 = vld [vmem:[#allocation2 + $0x58] sm:$0xff]
          %v648 = vld [vmem:[#allocation2 + $0x60] sm:$0xff]
          %v649 = vld [vmem:[#allocation2 + $0x68] sm:$0xff]
          %v650 = vld [vmem:[#allocation2 + $0x70] sm:$0xff]
          %v651 = vld [vmem:[#allocation2 + $0x78] sm:$0xff]
          %v652 = vld [vmem:[#allocation2 + $0x80] sm:$0xff]
          %v653 = vld [vmem:[#allocation2 + $0x88] sm:$0xff]
          %v654 = vld [vmem:[#allocation2 + $0x90] sm:$0xff]
          %v655 = vld [vmem:[#allocation2 + $0x98] sm:$0xff]
          %v656 = vld [vmem:[#allocation2 + $0xa0] sm:$0xff]
          %v657 = vld [vmem:[#allocation2 + $0xa8] sm:$0xff]
          %v658 = vld [vmem:[#allocation2 + $0xb0] sm:$0xff]
          %v659 = vld [vmem:[#allocation2 + $0xb8] sm:$0xff]
          %v660 = vld [vmem:[#allocation2 + $0xc0] sm:$0xff]
          %v661 = vld [vmem:[#allocation2 + $0xc8] sm:$0xff]
          %v662 = vld [vmem:[#allocation2 + $0xd0] sm:$0xff]
          %v663 = vld [vmem:[#allocation2 + $0xd8] sm:$0xff]
          %v664 = vld [vmem:[#allocation2 + $0xe0] sm:$0xff]
          %v665 = vld [vmem:[#allocation2 + $0xe8] sm:$0xff]
          %v666 = vld [vmem:[#allocation2 + $0xf0] sm:$0xff]
          %v667 = vld [vmem:[#allocation2 + $0xf8] sm:$0xff]
          %v668 = vld [vmem:[%s271] sm:$0xff]
          %v669 = vld [vmem:[%s271 + $0x8] sm:$0xff]
          %v670 = vld [vmem:[%s271 + $0x10] sm:$0xff]
          %v671 = vld [vmem:[%s271 + $0x18] sm:$0xff]
          %v672 = vld [vmem:[%s271 + $0x20] sm:$0xff]
          %v673 = vld [vmem:[%s271 + $0x28] sm:$0xff]
          %v674 = vld [vmem:[%s271 + $0x30] sm:$0xff]
          %v675 = vld [vmem:[%s271 + $0x38] sm:$0xff]
          %v676 = vld [vmem:[%s271 + $0x40] sm:$0xff]
          %v677 = vld [vmem:[%s271 + $0x48] sm:$0xff]
          %v678 = vld [vmem:[%s271 + $0x50] sm:$0xff]
          %v679 = vld [vmem:[%s271 + $0x58] sm:$0xff]
          %v680 = vld [vmem:[%s271 + $0x60] sm:$0xff]
          %v681 = vld [vmem:[%s271 + $0x68] sm:$0xff]
          %v682 = vld [vmem:[%s271 + $0x70] sm:$0xff]
          %v683 = vld [vmem:[%s271 + $0x78] sm:$0xff]
          %v684 = vld [vmem:[%s271 + $0x80] sm:$0xff]
          %v685 = vld [vmem:[%s271 + $0x88] sm:$0xff]
          %v686 = vld [vmem:[%s271 + $0x90] sm:$0xff]
          %v687 = vld [vmem:[%s271 + $0x98] sm:$0xff]
          %v688 = vld [vmem:[%s271 + $0xa0] sm:$0xff]
          %v689 = vld [vmem:[%s271 + $0xa8] sm:$0xff]
          %v690 = vld [vmem:[%s271 + $0xb0] sm:$0xff]
          %v691 = vld [vmem:[%s271 + $0xb8] sm:$0xff]
          %v692 = vld [vmem:[%s271 + $0xc0] sm:$0xff]
          %v693 = vld [vmem:[%s271 + $0xc8] sm:$0xff]
          %v694 = vld [vmem:[%s271 + $0xd0] sm:$0xff]
          %v695 = vld [vmem:[%s271 + $0xd8] sm:$0xff]
          %v696 = vld [vmem:[%s271 + $0xe0] sm:$0xff]
          %v697 = vld [vmem:[%s271 + $0xe8] sm:$0xff]
          %v698 = vld [vmem:[%s271 + $0xf0] sm:$0xff]
          %v699 = vld [vmem:[%s271 + $0xf8] sm:$0xff]
          %v700 = vadd.f32 %v636, %v668
          %v701 = vadd.f32 %v637, %v669
          %v702 = vadd.f32 %v638, %v670
          %v703 = vadd.f32 %v639, %v671
          %v704 = vadd.f32 %v640, %v672
          %v705 = vadd.f32 %v641, %v673
          %v706 = vadd.f32 %v642, %v674
          %v707 = vadd.f32 %v643, %v675
          %v708 = vadd.f32 %v644, %v676
          %v709 = vadd.f32 %v645, %v677
          %v710 = vadd.f32 %v646, %v678
          %v711 = vadd.f32 %v647, %v679
          %v712 = vadd.f32 %v648, %v680
          %v713 = vadd.f32 %v649, %v681
          %v714 = vadd.f32 %v650, %v682
          %v715 = vadd.f32 %v651, %v683
          %v716 = vadd.f32 %v652, %v684
          %v717 = vadd.f32 %v653, %v685
          %v718 = vadd.f32 %v654, %v686
          %v719 = vadd.f32 %v655, %v687
          %v720 = vadd.f32 %v656, %v688
          %v721 = vadd.f32 %v657, %v689
          %v722 = vadd.f32 %v658, %v690
          %v723 = vadd.f32 %v659, %v691
          %v724 = vadd.f32 %v660, %v692
          %v725 = vadd.f32 %v661, %v693
          %v726 = vadd.f32 %v662, %v694
          %v727 = vadd.f32 %v663, %v695
          %v728 = vadd.f32 %v664, %v696
          %v729 = vadd.f32 %v665, %v697
          %v730 = vadd.f32 %v666, %v698
          %v731 = vadd.f32 %v667, %v699
          %v732 = vxor.u32 %v700, 2147483648
          %v733 = vxor.u32 %v702, 2147483648
          %v734 = vxor.u32 %v704, 2147483648
          %v735 = vxor.u32 %v706, 2147483648
          %v736 = vxor.u32 %v708, 2147483648
          %v737 = vxor.u32 %v710, 2147483648
          %v738 = vxor.u32 %v712, 2147483648
          %v739 = vxor.u32 %v714, 2147483648
          %v740 = vxor.u32 %v716, 2147483648
          %v741 = vxor.u32 %v718, 2147483648
          %v742 = vxor.u32 %v720, 2147483648
          %v743 = vxor.u32 %v722, 2147483648
          %v744 = vxor.u32 %v724, 2147483648
          %v745 = vxor.u32 %v726, 2147483648
          %v746 = vxor.u32 %v728, 2147483648
          %v747 = vxor.u32 %v730, 2147483648
          %v748 = vmul.f32 %v732, 1.442695
          %v749 = vpow.pop %v748
          %v750 = vmul.f32 %v733, 1.442695
          %v751 = vpow.pop %v750
          %v752 = vmul.f32 %v734, 1.442695
          %v753 = vpow.pop %v752
          %v754 = vmul.f32 %v735, 1.442695
          %v755 = vpow.pop %v754
          %v756 = vmul.f32 %v736, 1.442695
          %v757 = vpow.pop %v756
          %v758 = vmul.f32 %v737, 1.442695
          %v759 = vpow.pop %v758
          %v760 = vmul.f32 %v738, 1.442695
          %v761 = vpow.pop %v760
          %v762 = vmul.f32 %v739, 1.442695
          %v763 = vpow.pop %v762
          %v764 = vmul.f32 %v740, 1.442695
          %v765 = vpow.pop %v764
          %v766 = vmul.f32 %v741, 1.442695
          %v767 = vpow.pop %v766
          %v768 = vmul.f32 %v742, 1.442695
          %v769 = vpow.pop %v768
          %v770 = vmul.f32 %v743, 1.442695
          %v771 = vpow.pop %v770
          %v772 = vmul.f32 %v744, 1.442695
          %v773 = vpow.pop %v772
          %v774 = vmul.f32 %v745, 1.442695
          %v775 = vpow.pop %v774
          %v776 = vmul.f32 %v746, 1.442695
          %v777 = vpow.pop %v776
          %v778 = vmul.f32 %v747, 1.442695
          %v779 = vpow.pop %v778
          %v780 = vadd.f32 %v749, 1.0
          %v781 = vadd.f32 %v751, 1.0
          %v782 = vadd.f32 %v753, 1.0
          %v783 = vadd.f32 %v755, 1.0
          %v784 = vadd.f32 %v757, 1.0
          %v785 = vadd.f32 %v759, 1.0
          %v786 = vadd.f32 %v761, 1.0
          %v787 = vadd.f32 %v763, 1.0
          %v788 = vadd.f32 %v765, 1.0
          %v789 = vadd.f32 %v767, 1.0
          %v790 = vadd.f32 %v769, 1.0
          %v791 = vadd.f32 %v771, 1.0
          %v792 = vadd.f32 %v773, 1.0
          %v793 = vadd.f32 %v775, 1.0
          %v794 = vadd.f32 %v777, 1.0
          %v795 = vadd.f32 %v779, 1.0
          %v796 = vrcp.pop %v780
          %v797 = vmul.f32 %v780, %v796
          %v798 = vsub.f32 1.0, %v797
          %v799 = vmul.f32 %v796, %v798
          %v800 = vadd.f32 %v796, %v799
          %vm801 = vweird.f32 %v780
          %vm802 = vweird.f32 %v796
          %vm803 = vmor %vm801, %vm802
          %v804 = vsel %vm803, %v796, %v800
          %v805 = vand.u32 2147483647, %v780
          %vm806 = vcmp.eq.f32.partialorder %v805, 8.507059e+37
          %v807 = vand.u32 %v780, 2147483648
          %v808 = vor.u32 1.1754944e-38, %v807
          %v809 = vsel %vm806, %v808, %v804
          %v810 = vmul.f32 1.0, %v809
          %v811 = vrcp.pop %v781
          %v812 = vmul.f32 %v781, %v811
          %v813 = vsub.f32 1.0, %v812
          %v814 = vmul.f32 %v811, %v813
          %v815 = vadd.f32 %v811, %v814
          %vm816 = vweird.f32 %v781
          %vm817 = vweird.f32 %v811
          %vm818 = vmor %vm816, %vm817
          %v819 = vsel %vm818, %v811, %v815
          %v820 = vand.u32 2147483647, %v781
          %vm821 = vcmp.eq.f32.partialorder %v820, 8.507059e+37
          %v822 = vand.u32 %v781, 2147483648
          %v823 = vor.u32 1.1754944e-38, %v822
          %v824 = vsel %vm821, %v823, %v819
          %v825 = vmul.f32 1.0, %v824
          %v826 = vrcp.pop %v782
          %v827 = vmul.f32 %v782, %v826
          %v828 = vsub.f32 1.0, %v827
          %v829 = vmul.f32 %v826, %v828
          %v830 = vadd.f32 %v826, %v829
          %vm831 = vweird.f32 %v782
          %vm832 = vweird.f32 %v826
          %vm833 = vmor %vm831, %vm832
          %v834 = vsel %vm833, %v826, %v830
          %v835 = vand.u32 2147483647, %v782
          %vm836 = vcmp.eq.f32.partialorder %v835, 8.507059e+37
          %v837 = vand.u32 %v782, 2147483648
          %v838 = vor.u32 1.1754944e-38, %v837
          %v839 = vsel %vm836, %v838, %v834
          %v840 = vmul.f32 1.0, %v839
          %v841 = vrcp.pop %v783
          %v842 = vmul.f32 %v783, %v841
          %v843 = vsub.f32 1.0, %v842
          %v844 = vmul.f32 %v841, %v843
          %v845 = vadd.f32 %v841, %v844
          %vm846 = vweird.f32 %v783
          %vm847 = vweird.f32 %v841
          %vm848 = vmor %vm846, %vm847
          %v849 = vsel %vm848, %v841, %v845
          %v850 = vand.u32 2147483647, %v783
          %vm851 = vcmp.eq.f32.partialorder %v850, 8.507059e+37
          %v852 = vand.u32 %v783, 2147483648
          %v853 = vor.u32 1.1754944e-38, %v852
          %v854 = vsel %vm851, %v853, %v849
          %v855 = vmul.f32 1.0, %v854
          %v856 = vrcp.pop %v784
          %v857 = vmul.f32 %v784, %v856
          %v858 = vsub.f32 1.0, %v857
          %v859 = vmul.f32 %v856, %v858
          %v860 = vadd.f32 %v856, %v859
          %vm861 = vweird.f32 %v784
          %vm862 = vweird.f32 %v856
          %vm863 = vmor %vm861, %vm862
          %v864 = vsel %vm863, %v856, %v860
          %v865 = vand.u32 2147483647, %v784
          %vm866 = vcmp.eq.f32.partialorder %v865, 8.507059e+37
          %v867 = vand.u32 %v784, 2147483648
          %v868 = vor.u32 1.1754944e-38, %v867
          %v869 = vsel %vm866, %v868, %v864
          %v870 = vmul.f32 1.0, %v869
          %v871 = vrcp.pop %v785
          %v872 = vmul.f32 %v785, %v871
          %v873 = vsub.f32 1.0, %v872
          %v874 = vmul.f32 %v871, %v873
          %v875 = vadd.f32 %v871, %v874
          %vm876 = vweird.f32 %v785
          %vm877 = vweird.f32 %v871
          %vm878 = vmor %vm876, %vm877
          %v879 = vsel %vm878, %v871, %v875
          %v880 = vand.u32 2147483647, %v785
          %vm881 = vcmp.eq.f32.partialorder %v880, 8.507059e+37
          %v882 = vand.u32 %v785, 2147483648
          %v883 = vor.u32 1.1754944e-38, %v882
          %v884 = vsel %vm881, %v883, %v879
          %v885 = vmul.f32 1.0, %v884
          %v886 = vrcp.pop %v786
          %v887 = vmul.f32 %v786, %v886
          %v888 = vsub.f32 1.0, %v887
          %v889 = vmul.f32 %v886, %v888
          %v890 = vadd.f32 %v886, %v889
          %vm891 = vweird.f32 %v786
          %vm892 = vweird.f32 %v886
          %vm893 = vmor %vm891, %vm892
          %v894 = vsel %vm893, %v886, %v890
          %v895 = vand.u32 2147483647, %v786
          %vm896 = vcmp.eq.f32.partialorder %v895, 8.507059e+37
          %v897 = vand.u32 %v786, 2147483648
          %v898 = vor.u32 1.1754944e-38, %v897
          %v899 = vsel %vm896, %v898, %v894
          %v900 = vmul.f32 1.0, %v899
          %v901 = vrcp.pop %v787
          %v902 = vmul.f32 %v787, %v901
          %v903 = vsub.f32 1.0, %v902
          %v904 = vmul.f32 %v901, %v903
          %v905 = vadd.f32 %v901, %v904
          %vm906 = vweird.f32 %v787
          %vm907 = vweird.f32 %v901
          %vm908 = vmor %vm906, %vm907
          %v909 = vsel %vm908, %v901, %v905
          %v910 = vand.u32 2147483647, %v787
          %vm911 = vcmp.eq.f32.partialorder %v910, 8.507059e+37
          %v912 = vand.u32 %v787, 2147483648
          %v913 = vor.u32 1.1754944e-38, %v912
          %v914 = vsel %vm911, %v913, %v909
          %v915 = vmul.f32 1.0, %v914
          %v916 = vrcp.pop %v788
          %v917 = vmul.f32 %v788, %v916
          %v918 = vsub.f32 1.0, %v917
          %v919 = vmul.f32 %v916, %v918
          %v920 = vadd.f32 %v916, %v919
          %vm921 = vweird.f32 %v788
          %vm922 = vweird.f32 %v916
          %vm923 = vmor %vm921, %vm922
          %v924 = vsel %vm923, %v916, %v920
          %v925 = vand.u32 2147483647, %v788
          %vm926 = vcmp.eq.f32.partialorder %v925, 8.507059e+37
          %v927 = vand.u32 %v788, 2147483648
          %v928 = vor.u32 1.1754944e-38, %v927
          %v929 = vsel %vm926, %v928, %v924
          %v930 = vmul.f32 1.0, %v929
          %v931 = vrcp.pop %v789
          %v932 = vmul.f32 %v789, %v931
          %v933 = vsub.f32 1.0, %v932
          %v934 = vmul.f32 %v931, %v933
          %v935 = vadd.f32 %v931, %v934
          %vm936 = vweird.f32 %v789
          %vm937 = vweird.f32 %v931
          %vm938 = vmor %vm936, %vm937
          %v939 = vsel %vm938, %v931, %v935
          %v940 = vand.u32 2147483647, %v789
          %vm941 = vcmp.eq.f32.partialorder %v940, 8.507059e+37
          %v942 = vand.u32 %v789, 2147483648
          %v943 = vor.u32 1.1754944e-38, %v942
          %v944 = vsel %vm941, %v943, %v939
          %v945 = vmul.f32 1.0, %v944
          %v946 = vrcp.pop %v790
          %v947 = vmul.f32 %v790, %v946
          %v948 = vsub.f32 1.0, %v947
          %v949 = vmul.f32 %v946, %v948
          %v950 = vadd.f32 %v946, %v949
          %vm951 = vweird.f32 %v790
          %vm952 = vweird.f32 %v946
          %vm953 = vmor %vm951, %vm952
          %v954 = vsel %vm953, %v946, %v950
          %v955 = vand.u32 2147483647, %v790
          %vm956 = vcmp.eq.f32.partialorder %v955, 8.507059e+37
          %v957 = vand.u32 %v790, 2147483648
          %v958 = vor.u32 1.1754944e-38, %v957
          %v959 = vsel %vm956, %v958, %v954
          %v960 = vmul.f32 1.0, %v959
          %v961 = vrcp.pop %v791
          %v962 = vmul.f32 %v791, %v961
          %v963 = vsub.f32 1.0, %v962
          %v964 = vmul.f32 %v961, %v963
          %v965 = vadd.f32 %v961, %v964
          %vm966 = vweird.f32 %v791
          %vm967 = vweird.f32 %v961
          %vm968 = vmor %vm966, %vm967
          %v969 = vsel %vm968, %v961, %v965
          %v970 = vand.u32 2147483647, %v791
          %vm971 = vcmp.eq.f32.partialorder %v970, 8.507059e+37
          %v972 = vand.u32 %v791, 2147483648
          %v973 = vor.u32 1.1754944e-38, %v972
          %v974 = vsel %vm971, %v973, %v969
          %v975 = vmul.f32 1.0, %v974
          %v976 = vrcp.pop %v792
          %v977 = vmul.f32 %v792, %v976
          %v978 = vsub.f32 1.0, %v977
          %v979 = vmul.f32 %v976, %v978
          %v980 = vadd.f32 %v976, %v979
          %vm981 = vweird.f32 %v792
          %vm982 = vweird.f32 %v976
          %vm983 = vmor %vm981, %vm982
          %v984 = vsel %vm983, %v976, %v980
          %v985 = vand.u32 2147483647, %v792
          %vm986 = vcmp.eq.f32.partialorder %v985, 8.507059e+37
          %v987 = vand.u32 %v792, 2147483648
          %v988 = vor.u32 1.1754944e-38, %v987
          %v989 = vsel %vm986, %v988, %v984
          %v990 = vmul.f32 1.0, %v989
          %v991 = vrcp.pop %v793
          %v992 = vmul.f32 %v793, %v991
          %v993 = vsub.f32 1.0, %v992
          %v994 = vmul.f32 %v991, %v993
          %v995 = vadd.f32 %v991, %v994
          %vm996 = vweird.f32 %v793
          %vm997 = vweird.f32 %v991
          %vm998 = vmor %vm996, %vm997
          %v999 = vsel %vm998, %v991, %v995
          %v1000 = vand.u32 2147483647, %v793
          %vm1001 = vcmp.eq.f32.partialorder %v1000, 8.507059e+37
          %v1002 = vand.u32 %v793, 2147483648
          %v1003 = vor.u32 1.1754944e-38, %v1002
          %v1004 = vsel %vm1001, %v1003, %v999
          %v1005 = vmul.f32 1.0, %v1004
          %v1006 = vrcp.pop %v794
          %v1007 = vmul.f32 %v794, %v1006
          %v1008 = vsub.f32 1.0, %v1007
          %v1009 = vmul.f32 %v1006, %v1008
          %v1010 = vadd.f32 %v1006, %v1009
          %vm1011 = vweird.f32 %v794
          %vm1012 = vweird.f32 %v1006
          %vm1013 = vmor %vm1011, %vm1012
          %v1014 = vsel %vm1013, %v1006, %v1010
          %v1015 = vand.u32 2147483647, %v794
          %vm1016 = vcmp.eq.f32.partialorder %v1015, 8.507059e+37
          %v1017 = vand.u32 %v794, 2147483648
          %v1018 = vor.u32 1.1754944e-38, %v1017
          %v1019 = vsel %vm1016, %v1018, %v1014
          %v1020 = vmul.f32 1.0, %v1019
          %v1021 = vrcp.pop %v795
          %v1022 = vmul.f32 %v795, %v1021
          %v1023 = vsub.f32 1.0, %v1022
          %v1024 = vmul.f32 %v1021, %v1023
          %v1025 = vadd.f32 %v1021, %v1024
          %vm1026 = vweird.f32 %v795
          %vm1027 = vweird.f32 %v1021
          %vm1028 = vmor %vm1026, %vm1027
          %v1029 = vsel %vm1028, %v1021, %v1025
          %v1030 = vand.u32 2147483647, %v795
          %vm1031 = vcmp.eq.f32.partialorder %v1030, 8.507059e+37
          %v1032 = vand.u32 %v795, 2147483648
          %v1033 = vor.u32 1.1754944e-38, %v1032
          %v1034 = vsel %vm1031, %v1033, %v1029
          %v1035 = vmul.f32 1.0, %v1034
          %v1036 = vxor.u32 %v701, 2147483648
          %v1037 = vxor.u32 %v703, 2147483648
          %v1038 = vxor.u32 %v705, 2147483648
          %v1039 = vxor.u32 %v707, 2147483648
          %v1040 = vxor.u32 %v709, 2147483648
          %v1041 = vxor.u32 %v711, 2147483648
          %v1042 = vxor.u32 %v713, 2147483648
          %v1043 = vxor.u32 %v715, 2147483648
          %v1044 = vxor.u32 %v717, 2147483648
          %v1045 = vxor.u32 %v719, 2147483648
          %v1046 = vxor.u32 %v721, 2147483648
          %v1047 = vxor.u32 %v723, 2147483648
          %v1048 = vxor.u32 %v725, 2147483648
          %v1049 = vxor.u32 %v727, 2147483648
          %v1050 = vxor.u32 %v729, 2147483648
          %v1051 = vxor.u32 %v731, 2147483648
          %v1052 = vmul.f32 %v1036, 1.442695
          %v1053 = vpow.pop %v1052
          %v1054 = vmul.f32 %v1037, 1.442695
          %v1055 = vpow.pop %v1054
          %v1056 = vmul.f32 %v1038, 1.442695
          %v1057 = vpow.pop %v1056
          %v1058 = vmul.f32 %v1039, 1.442695
          %v1059 = vpow.pop %v1058
          %v1060 = vmul.f32 %v1040, 1.442695
          %v1061 = vpow.pop %v1060
          %v1062 = vmul.f32 %v1041, 1.442695
          %v1063 = vpow.pop %v1062
          %v1064 = vmul.f32 %v1042, 1.442695
          %v1065 = vpow.pop %v1064
          %v1066 = vmul.f32 %v1043, 1.442695
          %v1067 = vpow.pop %v1066
          %v1068 = vmul.f32 %v1044, 1.442695
          %v1069 = vpow.pop %v1068
          %v1070 = vmul.f32 %v1045, 1.442695
          %v1071 = vpow.pop %v1070
          %v1072 = vmul.f32 %v1046, 1.442695
          %v1073 = vpow.pop %v1072
          %v1074 = vmul.f32 %v1047, 1.442695
          %v1075 = vpow.pop %v1074
          %v1076 = vmul.f32 %v1048, 1.442695
          %v1077 = vpow.pop %v1076
          %v1078 = vmul.f32 %v1049, 1.442695
          %v1079 = vpow.pop %v1078
          %v1080 = vmul.f32 %v1050, 1.442695
          %v1081 = vpow.pop %v1080
          %v1082 = vmul.f32 %v1051, 1.442695
          %v1083 = vpow.pop %v1082
          %v1084 = vadd.f32 %v1053, 1.0
          %v1085 = vadd.f32 %v1055, 1.0
          %v1086 = vadd.f32 %v1057, 1.0
          %v1087 = vadd.f32 %v1059, 1.0
          %v1088 = vadd.f32 %v1061, 1.0
          %v1089 = vadd.f32 %v1063, 1.0
          %v1090 = vadd.f32 %v1065, 1.0
          %v1091 = vadd.f32 %v1067, 1.0
          %v1092 = vadd.f32 %v1069, 1.0
          %v1093 = vadd.f32 %v1071, 1.0
          %v1094 = vadd.f32 %v1073, 1.0
          %v1095 = vadd.f32 %v1075, 1.0
          %v1096 = vadd.f32 %v1077, 1.0
          %v1097 = vadd.f32 %v1079, 1.0
          %v1098 = vadd.f32 %v1081, 1.0
          %v1099 = vadd.f32 %v1083, 1.0
          %v1100 = vrcp.pop %v1084
          %v1101 = vmul.f32 %v1084, %v1100
          %v1102 = vsub.f32 1.0, %v1101
          %v1103 = vmul.f32 %v1100, %v1102
          %v1104 = vadd.f32 %v1100, %v1103
          %vm1105 = vweird.f32 %v1084
          %vm1106 = vweird.f32 %v1100
          %vm1107 = vmor %vm1105, %vm1106
          %v1108 = vsel %vm1107, %v1100, %v1104
          %v1109 = vand.u32 2147483647, %v1084
          %vm1110 = vcmp.eq.f32.partialorder %v1109, 8.507059e+37
          %v1111 = vand.u32 %v1084, 2147483648
          %v1112 = vor.u32 1.1754944e-38, %v1111
          %v1113 = vsel %vm1110, %v1112, %v1108
          %v1114 = vmul.f32 1.0, %v1113
          %v1115 = vrcp.pop %v1085
          %v1116 = vmul.f32 %v1085, %v1115
          %v1117 = vsub.f32 1.0, %v1116
          %v1118 = vmul.f32 %v1115, %v1117
          %v1119 = vadd.f32 %v1115, %v1118
          %vm1120 = vweird.f32 %v1085
          %vm1121 = vweird.f32 %v1115
          %vm1122 = vmor %vm1120, %vm1121
          %v1123 = vsel %vm1122, %v1115, %v1119
          %v1124 = vand.u32 2147483647, %v1085
          %vm1125 = vcmp.eq.f32.partialorder %v1124, 8.507059e+37
          %v1126 = vand.u32 %v1085, 2147483648
          %v1127 = vor.u32 1.1754944e-38, %v1126
          %v1128 = vsel %vm1125, %v1127, %v1123
          %v1129 = vmul.f32 1.0, %v1128
          %v1130 = vrcp.pop %v1086
          %v1131 = vmul.f32 %v1086, %v1130
          %v1132 = vsub.f32 1.0, %v1131
          %v1133 = vmul.f32 %v1130, %v1132
          %v1134 = vadd.f32 %v1130, %v1133
          %vm1135 = vweird.f32 %v1086
          %vm1136 = vweird.f32 %v1130
          %vm1137 = vmor %vm1135, %vm1136
          %v1138 = vsel %vm1137, %v1130, %v1134
          %v1139 = vand.u32 2147483647, %v1086
          %vm1140 = vcmp.eq.f32.partialorder %v1139, 8.507059e+37
          %v1141 = vand.u32 %v1086, 2147483648
          %v1142 = vor.u32 1.1754944e-38, %v1141
          %v1143 = vsel %vm1140, %v1142, %v1138
          %v1144 = vmul.f32 1.0, %v1143
          %v1145 = vrcp.pop %v1087
          %v1146 = vmul.f32 %v1087, %v1145
          %v1147 = vsub.f32 1.0, %v1146
          %v1148 = vmul.f32 %v1145, %v1147
          %v1149 = vadd.f32 %v1145, %v1148
          %vm1150 = vweird.f32 %v1087
          %vm1151 = vweird.f32 %v1145
          %vm1152 = vmor %vm1150, %vm1151
          %v1153 = vsel %vm1152, %v1145, %v1149
          %v1154 = vand.u32 2147483647, %v1087
          %vm1155 = vcmp.eq.f32.partialorder %v1154, 8.507059e+37
          %v1156 = vand.u32 %v1087, 2147483648
          %v1157 = vor.u32 1.1754944e-38, %v1156
          %v1158 = vsel %vm1155, %v1157, %v1153
          %v1159 = vmul.f32 1.0, %v1158
          %v1160 = vrcp.pop %v1088
          %v1161 = vmul.f32 %v1088, %v1160
          %v1162 = vsub.f32 1.0, %v1161
          %v1163 = vmul.f32 %v1160, %v1162
          %v1164 = vadd.f32 %v1160, %v1163
          %vm1165 = vweird.f32 %v1088
          %vm1166 = vweird.f32 %v1160
          %vm1167 = vmor %vm1165, %vm1166
          %v1168 = vsel %vm1167, %v1160, %v1164
          %v1169 = vand.u32 2147483647, %v1088
          %vm1170 = vcmp.eq.f32.partialorder %v1169, 8.507059e+37
          %v1171 = vand.u32 %v1088, 2147483648
          %v1172 = vor.u32 1.1754944e-38, %v1171
          %v1173 = vsel %vm1170, %v1172, %v1168
          %v1174 = vmul.f32 1.0, %v1173
          %v1175 = vrcp.pop %v1089
          %v1176 = vmul.f32 %v1089, %v1175
          %v1177 = vsub.f32 1.0, %v1176
          %v1178 = vmul.f32 %v1175, %v1177
          %v1179 = vadd.f32 %v1175, %v1178
          %vm1180 = vweird.f32 %v1089
          %vm1181 = vweird.f32 %v1175
          %vm1182 = vmor %vm1180, %vm1181
          %v1183 = vsel %vm1182, %v1175, %v1179
          %v1184 = vand.u32 2147483647, %v1089
          %vm1185 = vcmp.eq.f32.partialorder %v1184, 8.507059e+37
          %v1186 = vand.u32 %v1089, 2147483648
          %v1187 = vor.u32 1.1754944e-38, %v1186
          %v1188 = vsel %vm1185, %v1187, %v1183
          %v1189 = vmul.f32 1.0, %v1188
          %v1190 = vrcp.pop %v1090
          %v1191 = vmul.f32 %v1090, %v1190
          %v1192 = vsub.f32 1.0, %v1191
          %v1193 = vmul.f32 %v1190, %v1192
          %v1194 = vadd.f32 %v1190, %v1193
          %vm1195 = vweird.f32 %v1090
          %vm1196 = vweird.f32 %v1190
          %vm1197 = vmor %vm1195, %vm1196
          %v1198 = vsel %vm1197, %v1190, %v1194
          %v1199 = vand.u32 2147483647, %v1090
          %vm1200 = vcmp.eq.f32.partialorder %v1199, 8.507059e+37
          %v1201 = vand.u32 %v1090, 2147483648
          %v1202 = vor.u32 1.1754944e-38, %v1201
          %v1203 = vsel %vm1200, %v1202, %v1198
          %v1204 = vmul.f32 1.0, %v1203
          %v1205 = vrcp.pop %v1091
          %v1206 = vmul.f32 %v1091, %v1205
          %v1207 = vsub.f32 1.0, %v1206
          %v1208 = vmul.f32 %v1205, %v1207
          %v1209 = vadd.f32 %v1205, %v1208
          %vm1210 = vweird.f32 %v1091
          %vm1211 = vweird.f32 %v1205
          %vm1212 = vmor %vm1210, %vm1211
          %v1213 = vsel %vm1212, %v1205, %v1209
          %v1214 = vand.u32 2147483647, %v1091
          %vm1215 = vcmp.eq.f32.partialorder %v1214, 8.507059e+37
          %v1216 = vand.u32 %v1091, 2147483648
          %v1217 = vor.u32 1.1754944e-38, %v1216
          %v1218 = vsel %vm1215, %v1217, %v1213
          %v1219 = vmul.f32 1.0, %v1218
          %v1220 = vrcp.pop %v1092
          %v1221 = vmul.f32 %v1092, %v1220
          %v1222 = vsub.f32 1.0, %v1221
          %v1223 = vmul.f32 %v1220, %v1222
          %v1224 = vadd.f32 %v1220, %v1223
          %vm1225 = vweird.f32 %v1092
          %vm1226 = vweird.f32 %v1220
          %vm1227 = vmor %vm1225, %vm1226
          %v1228 = vsel %vm1227, %v1220, %v1224
          %v1229 = vand.u32 2147483647, %v1092
          %vm1230 = vcmp.eq.f32.partialorder %v1229, 8.507059e+37
          %v1231 = vand.u32 %v1092, 2147483648
          %v1232 = vor.u32 1.1754944e-38, %v1231
          %v1233 = vsel %vm1230, %v1232, %v1228
          %v1234 = vmul.f32 1.0, %v1233
          %v1235 = vrcp.pop %v1093
          %v1236 = vmul.f32 %v1093, %v1235
          %v1237 = vsub.f32 1.0, %v1236
          %v1238 = vmul.f32 %v1235, %v1237
          %v1239 = vadd.f32 %v1235, %v1238
          %vm1240 = vweird.f32 %v1093
          %vm1241 = vweird.f32 %v1235
          %vm1242 = vmor %vm1240, %vm1241
          %v1243 = vsel %vm1242, %v1235, %v1239
          %v1244 = vand.u32 2147483647, %v1093
          %vm1245 = vcmp.eq.f32.partialorder %v1244, 8.507059e+37
          %v1246 = vand.u32 %v1093, 2147483648
          %v1247 = vor.u32 1.1754944e-38, %v1246
          %v1248 = vsel %vm1245, %v1247, %v1243
          %v1249 = vmul.f32 1.0, %v1248
          %v1250 = vrcp.pop %v1094
          %v1251 = vmul.f32 %v1094, %v1250
          %v1252 = vsub.f32 1.0, %v1251
          %v1253 = vmul.f32 %v1250, %v1252
          %v1254 = vadd.f32 %v1250, %v1253
          %vm1255 = vweird.f32 %v1094
          %vm1256 = vweird.f32 %v1250
          %vm1257 = vmor %vm1255, %vm1256
          %v1258 = vsel %vm1257, %v1250, %v1254
          %v1259 = vand.u32 2147483647, %v1094
          %vm1260 = vcmp.eq.f32.partialorder %v1259, 8.507059e+37
          %v1261 = vand.u32 %v1094, 2147483648
          %v1262 = vor.u32 1.1754944e-38, %v1261
          %v1263 = vsel %vm1260, %v1262, %v1258
          %v1264 = vmul.f32 1.0, %v1263
          %v1265 = vrcp.pop %v1095
          %v1266 = vmul.f32 %v1095, %v1265
          %v1267 = vsub.f32 1.0, %v1266
          %v1268 = vmul.f32 %v1265, %v1267
          %v1269 = vadd.f32 %v1265, %v1268
          %vm1270 = vweird.f32 %v1095
          %vm1271 = vweird.f32 %v1265
          %vm1272 = vmor %vm1270, %vm1271
          %v1273 = vsel %vm1272, %v1265, %v1269
          %v1274 = vand.u32 2147483647, %v1095
          %vm1275 = vcmp.eq.f32.partialorder %v1274, 8.507059e+37
          %v1276 = vand.u32 %v1095, 2147483648
          %v1277 = vor.u32 1.1754944e-38, %v1276
          %v1278 = vsel %vm1275, %v1277, %v1273
          %v1279 = vmul.f32 1.0, %v1278
          %v1280 = vrcp.pop %v1096
          %v1281 = vmul.f32 %v1096, %v1280
          %v1282 = vsub.f32 1.0, %v1281
          %v1283 = vmul.f32 %v1280, %v1282
          %v1284 = vadd.f32 %v1280, %v1283
          %vm1285 = vweird.f32 %v1096
          %vm1286 = vweird.f32 %v1280
          %vm1287 = vmor %vm1285, %vm1286
          %v1288 = vsel %vm1287, %v1280, %v1284
          %v1289 = vand.u32 2147483647, %v1096
          %vm1290 = vcmp.eq.f32.partialorder %v1289, 8.507059e+37
          %v1291 = vand.u32 %v1096, 2147483648
          %v1292 = vor.u32 1.1754944e-38, %v1291
          %v1293 = vsel %vm1290, %v1292, %v1288
          %v1294 = vmul.f32 1.0, %v1293
          %v1295 = vrcp.pop %v1097
          %v1296 = vmul.f32 %v1097, %v1295
          %v1297 = vsub.f32 1.0, %v1296
          %v1298 = vmul.f32 %v1295, %v1297
          %v1299 = vadd.f32 %v1295, %v1298
          %vm1300 = vweird.f32 %v1097
          %vm1301 = vweird.f32 %v1295
          %vm1302 = vmor %vm1300, %vm1301
          %v1303 = vsel %vm1302, %v1295, %v1299
          %v1304 = vand.u32 2147483647, %v1097
          %vm1305 = vcmp.eq.f32.partialorder %v1304, 8.507059e+37
          %v1306 = vand.u32 %v1097, 2147483648
          %v1307 = vor.u32 1.1754944e-38, %v1306
          %v1308 = vsel %vm1305, %v1307, %v1303
          %v1309 = vmul.f32 1.0, %v1308
          %v1310 = vrcp.pop %v1098
          %v1311 = vmul.f32 %v1098, %v1310
          %v1312 = vsub.f32 1.0, %v1311
          %v1313 = vmul.f32 %v1310, %v1312
          %v1314 = vadd.f32 %v1310, %v1313
          %vm1315 = vweird.f32 %v1098
          %vm1316 = vweird.f32 %v1310
          %vm1317 = vmor %vm1315, %vm1316
          %v1318 = vsel %vm1317, %v1310, %v1314
          %v1319 = vand.u32 2147483647, %v1098
          %vm1320 = vcmp.eq.f32.partialorder %v1319, 8.507059e+37
          %v1321 = vand.u32 %v1098, 2147483648
          %v1322 = vor.u32 1.1754944e-38, %v1321
          %v1323 = vsel %vm1320, %v1322, %v1318
          %v1324 = vmul.f32 1.0, %v1323
          %v1325 = vrcp.pop %v1099
          %v1326 = vmul.f32 %v1099, %v1325
          %v1327 = vsub.f32 1.0, %v1326
          %v1328 = vmul.f32 %v1325, %v1327
          %v1329 = vadd.f32 %v1325, %v1328
          %vm1330 = vweird.f32 %v1099
          %vm1331 = vweird.f32 %v1325
          %vm1332 = vmor %vm1330, %vm1331
          %v1333 = vsel %vm1332, %v1325, %v1329
          %v1334 = vand.u32 2147483647, %v1099
          %vm1335 = vcmp.eq.f32.partialorder %v1334, 8.507059e+37
          %v1336 = vand.u32 %v1099, 2147483648
          %v1337 = vor.u32 1.1754944e-38, %v1336
          %v1338 = vsel %vm1335, %v1337, %v1333
          %v1339 = vmul.f32 1.0, %v1338
          %v1340 = vtanh.pop %v701
          %v1341 = vtanh.pop %v703
          %v1342 = vtanh.pop %v705
          %v1343 = vtanh.pop %v707
          %v1344 = vtanh.pop %v709
          %v1345 = vtanh.pop %v711
          %v1346 = vtanh.pop %v713
          %v1347 = vtanh.pop %v715
          %v1348 = vtanh.pop %v717
          %v1349 = vtanh.pop %v719
          %v1350 = vtanh.pop %v721
          %v1351 = vtanh.pop %v723
          %v1352 = vtanh.pop %v725
          %v1353 = vtanh.pop %v727
          %v1354 = vtanh.pop %v729
          %v1355 = vtanh.pop %v731
          %v1356 = vtanh.pop %v1340
          %v1357 = vtanh.pop %v1341
          %v1358 = vtanh.pop %v1342
          %v1359 = vtanh.pop %v1343
          %v1360 = vtanh.pop %v1344
          %v1361 = vtanh.pop %v1345
          %v1362 = vtanh.pop %v1346
          %v1363 = vtanh.pop %v1347
          %v1364 = vtanh.pop %v1348
          %v1365 = vtanh.pop %v1349
          %v1366 = vtanh.pop %v1350
          %v1367 = vtanh.pop %v1351
          %v1368 = vtanh.pop %v1352
          %v1369 = vtanh.pop %v1353
          %v1370 = vtanh.pop %v1354
          %v1371 = vtanh.pop %v1355
          %v1372 = vld [vmem:[%s313] sm:$0xff]
          %v1373 = vld [vmem:[%s313 + $0x8] sm:$0xff]
          %v1374 = vld [vmem:[%s313 + $0x10] sm:$0xff]
          %v1375 = vld [vmem:[%s313 + $0x18] sm:$0xff]
          %v1376 = vld [vmem:[%s313 + $0x20] sm:$0xff]
          %v1377 = vld [vmem:[%s313 + $0x28] sm:$0xff]
          %v1378 = vld [vmem:[%s313 + $0x30] sm:$0xff]
          %v1379 = vld [vmem:[%s313 + $0x38] sm:$0xff]
          %v1380 = vld [vmem:[%s313 + $0x40] sm:$0xff]
          %v1381 = vld [vmem:[%s313 + $0x48] sm:$0xff]
          %v1382 = vld [vmem:[%s313 + $0x50] sm:$0xff]
          %v1383 = vld [vmem:[%s313 + $0x58] sm:$0xff]
          %v1384 = vld [vmem:[%s313 + $0x60] sm:$0xff]
          %v1385 = vld [vmem:[%s313 + $0x68] sm:$0xff]
          %v1386 = vld [vmem:[%s313 + $0x70] sm:$0xff]
          %v1387 = vld [vmem:[%s313 + $0x78] sm:$0xff]
          %1404 = vrot.lane.b32.xlu0 %v1372, 64
          %v1405 = vpop.permute.xlu0 %1404
          %1406 = vrot.lane.b32.xlu0 %v1373, 64
          %v1407 = vpop.permute.xlu0 %1406
          %1408 = vrot.lane.b32.xlu0 %v1374, 64
          %v1409 = vpop.permute.xlu0 %1408
          %1410 = vrot.lane.b32.xlu0 %v1375, 64
          %v1411 = vpop.permute.xlu0 %1410
          %1412 = vrot.lane.b32.xlu0 %v1376, 64
          %v1413 = vpop.permute.xlu0 %1412
          %1414 = vrot.lane.b32.xlu0 %v1377, 64
          %v1415 = vpop.permute.xlu0 %1414
          %1416 = vrot.lane.b32.xlu0 %v1378, 64
          %v1417 = vpop.permute.xlu0 %1416
          %1418 = vrot.lane.b32.xlu0 %v1379, 64
          %v1419 = vpop.permute.xlu0 %1418
          %1420 = vrot.lane.b32.xlu0 %v1380, 64
          %v1421 = vpop.permute.xlu0 %1420
          %1422 = vrot.lane.b32.xlu0 %v1381, 64
          %v1423 = vpop.permute.xlu0 %1422
          %1424 = vrot.lane.b32.xlu0 %v1382, 64
          %v1425 = vpop.permute.xlu0 %1424
          %1426 = vrot.lane.b32.xlu0 %v1383, 64
          %v1427 = vpop.permute.xlu0 %1426
          %1428 = vrot.lane.b32.xlu0 %v1384, 64
          %v1429 = vpop.permute.xlu0 %1428
          %1430 = vrot.lane.b32.xlu0 %v1385, 64
          %v1431 = vpop.permute.xlu0 %1430
          %1432 = vrot.lane.b32.xlu0 %v1386, 64
          %v1433 = vpop.permute.xlu0 %1432
          %1434 = vrot.lane.b32.xlu0 %v1387, 64
          %v1435 = vpop.permute.xlu0 %1434
          %v1452 = vmul.f32 %v810, %v1405
          %v1453 = vmul.f32 %v825, %v1407
          %v1454 = vmul.f32 %v840, %v1409
          %v1455 = vmul.f32 %v855, %v1411
          %v1456 = vmul.f32 %v870, %v1413
          %v1457 = vmul.f32 %v885, %v1415
          %v1458 = vmul.f32 %v900, %v1417
          %v1459 = vmul.f32 %v915, %v1419
          %v1460 = vmul.f32 %v930, %v1421
          %v1461 = vmul.f32 %v945, %v1423
          %v1462 = vmul.f32 %v960, %v1425
          %v1463 = vmul.f32 %v975, %v1427
          %v1464 = vmul.f32 %v990, %v1429
          %v1465 = vmul.f32 %v1005, %v1431
          %v1466 = vmul.f32 %v1020, %v1433
          %v1467 = vmul.f32 %v1035, %v1435
          %1484 = vrot.lane.b32.xlu0 %v1356, 64
          %v1485 = vpop.permute.xlu0 %1484
          %1486 = vrot.lane.b32.xlu0 %v1357, 64
          %v1487 = vpop.permute.xlu0 %1486
          %1488 = vrot.lane.b32.xlu0 %v1358, 64
          %v1489 = vpop.permute.xlu0 %1488
          %1490 = vrot.lane.b32.xlu0 %v1359, 64
          %v1491 = vpop.permute.xlu0 %1490
          %1492 = vrot.lane.b32.xlu0 %v1360, 64
          %v1493 = vpop.permute.xlu0 %1492
          %1494 = vrot.lane.b32.xlu0 %v1361, 64
          %v1495 = vpop.permute.xlu0 %1494
          %1496 = vrot.lane.b32.xlu0 %v1362, 64
          %v1497 = vpop.permute.xlu0 %1496
          %1498 = vrot.lane.b32.xlu0 %v1363, 64
          %v1499 = vpop.permute.xlu0 %1498
          %1500 = vrot.lane.b32.xlu0 %v1364, 64
          %v1501 = vpop.permute.xlu0 %1500
          %1502 = vrot.lane.b32.xlu0 %v1365, 64
          %v1503 = vpop.permute.xlu0 %1502
          %1504 = vrot.lane.b32.xlu0 %v1366, 64
          %v1505 = vpop.permute.xlu0 %1504
          %1506 = vrot.lane.b32.xlu0 %v1367, 64
          %v1507 = vpop.permute.xlu0 %1506
          %1508 = vrot.lane.b32.xlu0 %v1368, 64
          %v1509 = vpop.permute.xlu0 %1508
          %1510 = vrot.lane.b32.xlu0 %v1369, 64
          %v1511 = vpop.permute.xlu0 %1510
          %1512 = vrot.lane.b32.xlu0 %v1370, 64
          %v1513 = vpop.permute.xlu0 %1512
          %1514 = vrot.lane.b32.xlu0 %v1371, 64
          %v1515 = vpop.permute.xlu0 %1514
          %v1532 = vmul.f32 %v810, %v1485
          %v1533 = vmul.f32 %v825, %v1487
          %v1534 = vmul.f32 %v840, %v1489
          %v1535 = vmul.f32 %v855, %v1491
          %v1536 = vmul.f32 %v870, %v1493
          %v1537 = vmul.f32 %v885, %v1495
          %v1538 = vmul.f32 %v900, %v1497
          %v1539 = vmul.f32 %v915, %v1499
          %v1540 = vmul.f32 %v930, %v1501
          %v1541 = vmul.f32 %v945, %v1503
          %v1542 = vmul.f32 %v960, %v1505
          %v1543 = vmul.f32 %v975, %v1507
          %v1544 = vmul.f32 %v990, %v1509
          %v1545 = vmul.f32 %v1005, %v1511
          %v1546 = vmul.f32 %v1020, %v1513
          %v1547 = vmul.f32 %v1035, %v1515
          %1564 = vrot.lane.b32.xlu0 %v1532, 64
          %v1565 = vpop.permute.xlu0 %1564
          %1566 = vrot.lane.b32.xlu0 %v1533, 64
          %v1567 = vpop.permute.xlu0 %1566
          %1568 = vrot.lane.b32.xlu0 %v1534, 64
          %v1569 = vpop.permute.xlu0 %1568
          %1570 = vrot.lane.b32.xlu0 %v1535, 64
          %v1571 = vpop.permute.xlu0 %1570
          %1572 = vrot.lane.b32.xlu0 %v1536, 64
          %v1573 = vpop.permute.xlu0 %1572
          %1574 = vrot.lane.b32.xlu0 %v1537, 64
          %v1575 = vpop.permute.xlu0 %1574
          %1576 = vrot.lane.b32.xlu0 %v1538, 64
          %v1577 = vpop.permute.xlu0 %1576
          %1578 = vrot.lane.b32.xlu0 %v1539, 64
          %v1579 = vpop.permute.xlu0 %1578
          %1580 = vrot.lane.b32.xlu0 %v1540, 64
          %v1581 = vpop.permute.xlu0 %1580
          %1582 = vrot.lane.b32.xlu0 %v1541, 64
          %v1583 = vpop.permute.xlu0 %1582
          %1584 = vrot.lane.b32.xlu0 %v1542, 64
          %v1585 = vpop.permute.xlu0 %1584
          %1586 = vrot.lane.b32.xlu0 %v1543, 64
          %v1587 = vpop.permute.xlu0 %1586
          %1588 = vrot.lane.b32.xlu0 %v1544, 64
          %v1589 = vpop.permute.xlu0 %1588
          %1590 = vrot.lane.b32.xlu0 %v1545, 64
          %v1591 = vpop.permute.xlu0 %1590
          %1592 = vrot.lane.b32.xlu0 %v1546, 64
          %v1593 = vpop.permute.xlu0 %1592
          %1594 = vrot.lane.b32.xlu0 %v1547, 64
          %v1595 = vpop.permute.xlu0 %1594
          %v1612 = vadd.f32 %v1452, %v1565
          %v1613 = vadd.f32 %v1453, %v1567
          %v1614 = vadd.f32 %v1454, %v1569
          %v1615 = vadd.f32 %v1455, %v1571
          %v1616 = vadd.f32 %v1456, %v1573
          %v1617 = vadd.f32 %v1457, %v1575
          %v1618 = vadd.f32 %v1458, %v1577
          %v1619 = vadd.f32 %v1459, %v1579
          %v1620 = vadd.f32 %v1460, %v1581
          %v1621 = vadd.f32 %v1461, %v1583
          %v1622 = vadd.f32 %v1462, %v1585
          %v1623 = vadd.f32 %v1463, %v1587
          %v1624 = vadd.f32 %v1464, %v1589
          %v1625 = vadd.f32 %v1465, %v1591
          %v1626 = vadd.f32 %v1466, %v1593
          %v1627 = vadd.f32 %v1467, %v1595
          %v1628 = vxor.u32 %v1612, 2147483648
          %v1629 = vxor.u32 %v1613, 2147483648
          %v1630 = vxor.u32 %v1614, 2147483648
          %v1631 = vxor.u32 %v1615, 2147483648
          %v1632 = vxor.u32 %v1616, 2147483648
          %v1633 = vxor.u32 %v1617, 2147483648
          %v1634 = vxor.u32 %v1618, 2147483648
          %v1635 = vxor.u32 %v1619, 2147483648
          %v1636 = vxor.u32 %v1620, 2147483648
          %v1637 = vxor.u32 %v1621, 2147483648
          %v1638 = vxor.u32 %v1622, 2147483648
          %v1639 = vxor.u32 %v1623, 2147483648
          %v1640 = vxor.u32 %v1624, 2147483648
          %v1641 = vxor.u32 %v1625, 2147483648
          %v1642 = vxor.u32 %v1626, 2147483648
          %v1643 = vxor.u32 %v1627, 2147483648
          %v1644 = vmul.f32 %v1628, 1.442695
          %v1645 = vpow.pop %v1644
          %v1646 = vmul.f32 %v1629, 1.442695
          %v1647 = vpow.pop %v1646
          %v1648 = vmul.f32 %v1630, 1.442695
          %v1649 = vpow.pop %v1648
          %v1650 = vmul.f32 %v1631, 1.442695
          %v1651 = vpow.pop %v1650
          %v1652 = vmul.f32 %v1632, 1.442695
          %v1653 = vpow.pop %v1652
          %v1654 = vmul.f32 %v1633, 1.442695
          %v1655 = vpow.pop %v1654
          %v1656 = vmul.f32 %v1634, 1.442695
          %v1657 = vpow.pop %v1656
          %v1658 = vmul.f32 %v1635, 1.442695
          %v1659 = vpow.pop %v1658
          %v1660 = vmul.f32 %v1636, 1.442695
          %v1661 = vpow.pop %v1660
          %v1662 = vmul.f32 %v1637, 1.442695
          %v1663 = vpow.pop %v1662
          %v1664 = vmul.f32 %v1638, 1.442695
          %v1665 = vpow.pop %v1664
          %v1666 = vmul.f32 %v1639, 1.442695
          %v1667 = vpow.pop %v1666
          %v1668 = vmul.f32 %v1640, 1.442695
          %v1669 = vpow.pop %v1668
          %v1670 = vmul.f32 %v1641, 1.442695
          %v1671 = vpow.pop %v1670
          %v1672 = vmul.f32 %v1642, 1.442695
          %v1673 = vpow.pop %v1672
          %v1674 = vmul.f32 %v1643, 1.442695
          %v1675 = vpow.pop %v1674
          %v1676 = vadd.f32 %v1645, 1.0
          %v1677 = vadd.f32 %v1647, 1.0
          %v1678 = vadd.f32 %v1649, 1.0
          %v1679 = vadd.f32 %v1651, 1.0
          %v1680 = vadd.f32 %v1653, 1.0
          %v1681 = vadd.f32 %v1655, 1.0
          %v1682 = vadd.f32 %v1657, 1.0
          %v1683 = vadd.f32 %v1659, 1.0
          %v1684 = vadd.f32 %v1661, 1.0
          %v1685 = vadd.f32 %v1663, 1.0
          %v1686 = vadd.f32 %v1665, 1.0
          %v1687 = vadd.f32 %v1667, 1.0
          %v1688 = vadd.f32 %v1669, 1.0
          %v1689 = vadd.f32 %v1671, 1.0
          %v1690 = vadd.f32 %v1673, 1.0
          %v1691 = vadd.f32 %v1675, 1.0
          %v1692 = vrcp.pop %v1676
          %v1693 = vmul.f32 %v1676, %v1692
          %v1694 = vsub.f32 1.0, %v1693
          %v1695 = vmul.f32 %v1692, %v1694
          %v1696 = vadd.f32 %v1692, %v1695
          %vm1697 = vweird.f32 %v1676
          %vm1698 = vweird.f32 %v1692
          %vm1699 = vmor %vm1697, %vm1698
          %v1700 = vsel %vm1699, %v1692, %v1696
          %v1701 = vand.u32 2147483647, %v1676
          %vm1702 = vcmp.eq.f32.partialorder %v1701, 8.507059e+37
          %v1703 = vand.u32 %v1676, 2147483648
          %v1704 = vor.u32 1.1754944e-38, %v1703
          %v1705 = vsel %vm1702, %v1704, %v1700
          %v1706 = vmul.f32 1.0, %v1705
          %v1707 = vrcp.pop %v1677
          %v1708 = vmul.f32 %v1677, %v1707
          %v1709 = vsub.f32 1.0, %v1708
          %v1710 = vmul.f32 %v1707, %v1709
          %v1711 = vadd.f32 %v1707, %v1710
          %vm1712 = vweird.f32 %v1677
          %vm1713 = vweird.f32 %v1707
          %vm1714 = vmor %vm1712, %vm1713
          %v1715 = vsel %vm1714, %v1707, %v1711
          %v1716 = vand.u32 2147483647, %v1677
          %vm1717 = vcmp.eq.f32.partialorder %v1716, 8.507059e+37
          %v1718 = vand.u32 %v1677, 2147483648
          %v1719 = vor.u32 1.1754944e-38, %v1718
          %v1720 = vsel %vm1717, %v1719, %v1715
          %v1721 = vmul.f32 1.0, %v1720
          %v1722 = vrcp.pop %v1678
          %v1723 = vmul.f32 %v1678, %v1722
          %v1724 = vsub.f32 1.0, %v1723
          %v1725 = vmul.f32 %v1722, %v1724
          %v1726 = vadd.f32 %v1722, %v1725
          %vm1727 = vweird.f32 %v1678
          %vm1728 = vweird.f32 %v1722
          %vm1729 = vmor %vm1727, %vm1728
          %v1730 = vsel %vm1729, %v1722, %v1726
          %v1731 = vand.u32 2147483647, %v1678
          %vm1732 = vcmp.eq.f32.partialorder %v1731, 8.507059e+37
          %v1733 = vand.u32 %v1678, 2147483648
          %v1734 = vor.u32 1.1754944e-38, %v1733
          %v1735 = vsel %vm1732, %v1734, %v1730
          %v1736 = vmul.f32 1.0, %v1735
          %v1737 = vrcp.pop %v1679
          %v1738 = vmul.f32 %v1679, %v1737
          %v1739 = vsub.f32 1.0, %v1738
          %v1740 = vmul.f32 %v1737, %v1739
          %v1741 = vadd.f32 %v1737, %v1740
          %vm1742 = vweird.f32 %v1679
          %vm1743 = vweird.f32 %v1737
          %vm1744 = vmor %vm1742, %vm1743
          %v1745 = vsel %vm1744, %v1737, %v1741
          %v1746 = vand.u32 2147483647, %v1679
          %vm1747 = vcmp.eq.f32.partialorder %v1746, 8.507059e+37
          %v1748 = vand.u32 %v1679, 2147483648
          %v1749 = vor.u32 1.1754944e-38, %v1748
          %v1750 = vsel %vm1747, %v1749, %v1745
          %v1751 = vmul.f32 1.0, %v1750
          %v1752 = vrcp.pop %v1680
          %v1753 = vmul.f32 %v1680, %v1752
          %v1754 = vsub.f32 1.0, %v1753
          %v1755 = vmul.f32 %v1752, %v1754
          %v1756 = vadd.f32 %v1752, %v1755
          %vm1757 = vweird.f32 %v1680
          %vm1758 = vweird.f32 %v1752
          %vm1759 = vmor %vm1757, %vm1758
          %v1760 = vsel %vm1759, %v1752, %v1756
          %v1761 = vand.u32 2147483647, %v1680
          %vm1762 = vcmp.eq.f32.partialorder %v1761, 8.507059e+37
          %v1763 = vand.u32 %v1680, 2147483648
          %v1764 = vor.u32 1.1754944e-38, %v1763
          %v1765 = vsel %vm1762, %v1764, %v1760
          %v1766 = vmul.f32 1.0, %v1765
          %v1767 = vrcp.pop %v1681
          %v1768 = vmul.f32 %v1681, %v1767
          %v1769 = vsub.f32 1.0, %v1768
          %v1770 = vmul.f32 %v1767, %v1769
          %v1771 = vadd.f32 %v1767, %v1770
          %vm1772 = vweird.f32 %v1681
          %vm1773 = vweird.f32 %v1767
          %vm1774 = vmor %vm1772, %vm1773
          %v1775 = vsel %vm1774, %v1767, %v1771
          %v1776 = vand.u32 2147483647, %v1681
          %vm1777 = vcmp.eq.f32.partialorder %v1776, 8.507059e+37
          %v1778 = vand.u32 %v1681, 2147483648
          %v1779 = vor.u32 1.1754944e-38, %v1778
          %v1780 = vsel %vm1777, %v1779, %v1775
          %v1781 = vmul.f32 1.0, %v1780
          %v1782 = vrcp.pop %v1682
          %v1783 = vmul.f32 %v1682, %v1782
          %v1784 = vsub.f32 1.0, %v1783
          %v1785 = vmul.f32 %v1782, %v1784
          %v1786 = vadd.f32 %v1782, %v1785
          %vm1787 = vweird.f32 %v1682
          %vm1788 = vweird.f32 %v1782
          %vm1789 = vmor %vm1787, %vm1788
          %v1790 = vsel %vm1789, %v1782, %v1786
          %v1791 = vand.u32 2147483647, %v1682
          %vm1792 = vcmp.eq.f32.partialorder %v1791, 8.507059e+37
          %v1793 = vand.u32 %v1682, 2147483648
          %v1794 = vor.u32 1.1754944e-38, %v1793
          %v1795 = vsel %vm1792, %v1794, %v1790
          %v1796 = vmul.f32 1.0, %v1795
          %v1797 = vrcp.pop %v1683
          %v1798 = vmul.f32 %v1683, %v1797
          %v1799 = vsub.f32 1.0, %v1798
          %v1800 = vmul.f32 %v1797, %v1799
          %v1801 = vadd.f32 %v1797, %v1800
          %vm1802 = vweird.f32 %v1683
          %vm1803 = vweird.f32 %v1797
          %vm1804 = vmor %vm1802, %vm1803
          %v1805 = vsel %vm1804, %v1797, %v1801
          %v1806 = vand.u32 2147483647, %v1683
          %vm1807 = vcmp.eq.f32.partialorder %v1806, 8.507059e+37
          %v1808 = vand.u32 %v1683, 2147483648
          %v1809 = vor.u32 1.1754944e-38, %v1808
          %v1810 = vsel %vm1807, %v1809, %v1805
          %v1811 = vmul.f32 1.0, %v1810
          %v1812 = vrcp.pop %v1684
          %v1813 = vmul.f32 %v1684, %v1812
          %v1814 = vsub.f32 1.0, %v1813
          %v1815 = vmul.f32 %v1812, %v1814
          %v1816 = vadd.f32 %v1812, %v1815
          %vm1817 = vweird.f32 %v1684
          %vm1818 = vweird.f32 %v1812
          %vm1819 = vmor %vm1817, %vm1818
          %v1820 = vsel %vm1819, %v1812, %v1816
          %v1821 = vand.u32 2147483647, %v1684
          %vm1822 = vcmp.eq.f32.partialorder %v1821, 8.507059e+37
          %v1823 = vand.u32 %v1684, 2147483648
          %v1824 = vor.u32 1.1754944e-38, %v1823
          %v1825 = vsel %vm1822, %v1824, %v1820
          %v1826 = vmul.f32 1.0, %v1825
          %v1827 = vrcp.pop %v1685
          %v1828 = vmul.f32 %v1685, %v1827
          %v1829 = vsub.f32 1.0, %v1828
          %v1830 = vmul.f32 %v1827, %v1829
          %v1831 = vadd.f32 %v1827, %v1830
          %vm1832 = vweird.f32 %v1685
          %vm1833 = vweird.f32 %v1827
          %vm1834 = vmor %vm1832, %vm1833
          %v1835 = vsel %vm1834, %v1827, %v1831
          %v1836 = vand.u32 2147483647, %v1685
          %vm1837 = vcmp.eq.f32.partialorder %v1836, 8.507059e+37
          %v1838 = vand.u32 %v1685, 2147483648
          %v1839 = vor.u32 1.1754944e-38, %v1838
          %v1840 = vsel %vm1837, %v1839, %v1835
          %v1841 = vmul.f32 1.0, %v1840
          %v1842 = vrcp.pop %v1686
          %v1843 = vmul.f32 %v1686, %v1842
          %v1844 = vsub.f32 1.0, %v1843
          %v1845 = vmul.f32 %v1842, %v1844
          %v1846 = vadd.f32 %v1842, %v1845
          %vm1847 = vweird.f32 %v1686
          %vm1848 = vweird.f32 %v1842
          %vm1849 = vmor %vm1847, %vm1848
          %v1850 = vsel %vm1849, %v1842, %v1846
          %v1851 = vand.u32 2147483647, %v1686
          %vm1852 = vcmp.eq.f32.partialorder %v1851, 8.507059e+37
          %v1853 = vand.u32 %v1686, 2147483648
          %v1854 = vor.u32 1.1754944e-38, %v1853
          %v1855 = vsel %vm1852, %v1854, %v1850
          %v1856 = vmul.f32 1.0, %v1855
          %v1857 = vrcp.pop %v1687
          %v1858 = vmul.f32 %v1687, %v1857
          %v1859 = vsub.f32 1.0, %v1858
          %v1860 = vmul.f32 %v1857, %v1859
          %v1861 = vadd.f32 %v1857, %v1860
          %vm1862 = vweird.f32 %v1687
          %vm1863 = vweird.f32 %v1857
          %vm1864 = vmor %vm1862, %vm1863
          %v1865 = vsel %vm1864, %v1857, %v1861
          %v1866 = vand.u32 2147483647, %v1687
          %vm1867 = vcmp.eq.f32.partialorder %v1866, 8.507059e+37
          %v1868 = vand.u32 %v1687, 2147483648
          %v1869 = vor.u32 1.1754944e-38, %v1868
          %v1870 = vsel %vm1867, %v1869, %v1865
          %v1871 = vmul.f32 1.0, %v1870
          %v1872 = vrcp.pop %v1688
          %v1873 = vmul.f32 %v1688, %v1872
          %v1874 = vsub.f32 1.0, %v1873
          %v1875 = vmul.f32 %v1872, %v1874
          %v1876 = vadd.f32 %v1872, %v1875
          %vm1877 = vweird.f32 %v1688
          %vm1878 = vweird.f32 %v1872
          %vm1879 = vmor %vm1877, %vm1878
          %v1880 = vsel %vm1879, %v1872, %v1876
          %v1881 = vand.u32 2147483647, %v1688
          %vm1882 = vcmp.eq.f32.partialorder %v1881, 8.507059e+37
          %v1883 = vand.u32 %v1688, 2147483648
          %v1884 = vor.u32 1.1754944e-38, %v1883
          %v1885 = vsel %vm1882, %v1884, %v1880
          %v1886 = vmul.f32 1.0, %v1885
          %v1887 = vrcp.pop %v1689
          %v1888 = vmul.f32 %v1689, %v1887
          %v1889 = vsub.f32 1.0, %v1888
          %v1890 = vmul.f32 %v1887, %v1889
          %v1891 = vadd.f32 %v1887, %v1890
          %vm1892 = vweird.f32 %v1689
          %vm1893 = vweird.f32 %v1887
          %vm1894 = vmor %vm1892, %vm1893
          %v1895 = vsel %vm1894, %v1887, %v1891
          %v1896 = vand.u32 2147483647, %v1689
          %vm1897 = vcmp.eq.f32.partialorder %v1896, 8.507059e+37
          %v1898 = vand.u32 %v1689, 2147483648
          %v1899 = vor.u32 1.1754944e-38, %v1898
          %v1900 = vsel %vm1897, %v1899, %v1895
          %v1901 = vmul.f32 1.0, %v1900
          %v1902 = vrcp.pop %v1690
          %v1903 = vmul.f32 %v1690, %v1902
          %v1904 = vsub.f32 1.0, %v1903
          %v1905 = vmul.f32 %v1902, %v1904
          %v1906 = vadd.f32 %v1902, %v1905
          %vm1907 = vweird.f32 %v1690
          %vm1908 = vweird.f32 %v1902
          %vm1909 = vmor %vm1907, %vm1908
          %v1910 = vsel %vm1909, %v1902, %v1906
          %v1911 = vand.u32 2147483647, %v1690
          %vm1912 = vcmp.eq.f32.partialorder %v1911, 8.507059e+37
          %v1913 = vand.u32 %v1690, 2147483648
          %v1914 = vor.u32 1.1754944e-38, %v1913
          %v1915 = vsel %vm1912, %v1914, %v1910
          %v1916 = vmul.f32 1.0, %v1915
          %v1917 = vrcp.pop %v1691
          %v1918 = vmul.f32 %v1691, %v1917
          %v1919 = vsub.f32 1.0, %v1918
          %v1920 = vmul.f32 %v1917, %v1919
          %v1921 = vadd.f32 %v1917, %v1920
          %vm1922 = vweird.f32 %v1691
          %vm1923 = vweird.f32 %v1917
          %vm1924 = vmor %vm1922, %vm1923
          %v1925 = vsel %vm1924, %v1917, %v1921
          %v1926 = vand.u32 2147483647, %v1691
          %vm1927 = vcmp.eq.f32.partialorder %v1926, 8.507059e+37
          %v1928 = vand.u32 %v1691, 2147483648
          %v1929 = vor.u32 1.1754944e-38, %v1928
          %v1930 = vsel %vm1927, %v1929, %v1925
          %v1931 = vmul.f32 1.0, %v1930
          %v1932 = vtanh.pop %v1706
          %v1933 = vtanh.pop %v1721
          %v1934 = vtanh.pop %v1736
          %v1935 = vtanh.pop %v1751
          %v1936 = vtanh.pop %v1766
          %v1937 = vtanh.pop %v1781
          %v1938 = vtanh.pop %v1796
          %v1939 = vtanh.pop %v1811
          %v1940 = vtanh.pop %v1826
          %v1941 = vtanh.pop %v1841
          %v1942 = vtanh.pop %v1856
          %v1943 = vtanh.pop %v1871
          %v1944 = vtanh.pop %v1886
          %v1945 = vtanh.pop %v1901
          %v1946 = vtanh.pop %v1916
          %v1947 = vtanh.pop %v1931
          %1964 = vrot.lane.b32.xlu0 %v1114, 64
          %v1965 = vpop.permute.xlu0 %1964
          %1966 = vrot.lane.b32.xlu0 %v1129, 64
          %v1967 = vpop.permute.xlu0 %1966
          %1968 = vrot.lane.b32.xlu0 %v1144, 64
          %v1969 = vpop.permute.xlu0 %1968
          %1970 = vrot.lane.b32.xlu0 %v1159, 64
          %v1971 = vpop.permute.xlu0 %1970
          %1972 = vrot.lane.b32.xlu0 %v1174, 64
          %v1973 = vpop.permute.xlu0 %1972
          %1974 = vrot.lane.b32.xlu0 %v1189, 64
          %v1975 = vpop.permute.xlu0 %1974
          %1976 = vrot.lane.b32.xlu0 %v1204, 64
          %v1977 = vpop.permute.xlu0 %1976
          %1978 = vrot.lane.b32.xlu0 %v1219, 64
          %v1979 = vpop.permute.xlu0 %1978
          %1980 = vrot.lane.b32.xlu0 %v1234, 64
          %v1981 = vpop.permute.xlu0 %1980
          %1982 = vrot.lane.b32.xlu0 %v1249, 64
          %v1983 = vpop.permute.xlu0 %1982
          %1984 = vrot.lane.b32.xlu0 %v1264, 64
          %v1985 = vpop.permute.xlu0 %1984
          %1986 = vrot.lane.b32.xlu0 %v1279, 64
          %v1987 = vpop.permute.xlu0 %1986
          %1988 = vrot.lane.b32.xlu0 %v1294, 64
          %v1989 = vpop.permute.xlu0 %1988
          %1990 = vrot.lane.b32.xlu0 %v1309, 64
          %v1991 = vpop.permute.xlu0 %1990
          %1992 = vrot.lane.b32.xlu0 %v1324, 64
          %v1993 = vpop.permute.xlu0 %1992
          %1994 = vrot.lane.b32.xlu0 %v1339, 64
          %v1995 = vpop.permute.xlu0 %1994
          %v2012 = vmul.f32 %v1932, %v1965
          %v2013 = vmul.f32 %v1933, %v1967
          %v2014 = vmul.f32 %v1934, %v1969
          %v2015 = vmul.f32 %v1935, %v1971
          %v2016 = vmul.f32 %v1936, %v1973
          %v2017 = vmul.f32 %v1937, %v1975
          %v2018 = vmul.f32 %v1938, %v1977
          %v2019 = vmul.f32 %v1939, %v1979
          %v2020 = vmul.f32 %v1940, %v1981
          %v2021 = vmul.f32 %v1941, %v1983
          %v2022 = vmul.f32 %v1942, %v1985
          %v2023 = vmul.f32 %v1943, %v1987
          %v2024 = vmul.f32 %v1944, %v1989
          %v2025 = vmul.f32 %v1945, %v1991
          %v2026 = vmul.f32 %v1946, %v1993
          %v2027 = vmul.f32 %v1947, %v1995
          %2044 = vrot.lane.b32.xlu0 %v2012, 64
          %v2045 = vpop.permute.xlu0 %2044
          %2046 = vrot.lane.b32.xlu0 %v2013, 64
          %v2047 = vpop.permute.xlu0 %2046
          %2048 = vrot.lane.b32.xlu0 %v2014, 64
          %v2049 = vpop.permute.xlu0 %2048
          %2050 = vrot.lane.b32.xlu0 %v2015, 64
          %v2051 = vpop.permute.xlu0 %2050
          %2052 = vrot.lane.b32.xlu0 %v2016, 64
          %v2053 = vpop.permute.xlu0 %2052
          %2054 = vrot.lane.b32.xlu0 %v2017, 64
          %v2055 = vpop.permute.xlu0 %2054
          %2056 = vrot.lane.b32.xlu0 %v2018, 64
          %v2057 = vpop.permute.xlu0 %2056
          %2058 = vrot.lane.b32.xlu0 %v2019, 64
          %v2059 = vpop.permute.xlu0 %2058
          %2060 = vrot.lane.b32.xlu0 %v2020, 64
          %v2061 = vpop.permute.xlu0 %2060
          %2062 = vrot.lane.b32.xlu0 %v2021, 64
          %v2063 = vpop.permute.xlu0 %2062
          %2064 = vrot.lane.b32.xlu0 %v2022, 64
          %v2065 = vpop.permute.xlu0 %2064
          %2066 = vrot.lane.b32.xlu0 %v2023, 64
          %v2067 = vpop.permute.xlu0 %2066
          %2068 = vrot.lane.b32.xlu0 %v2024, 64
          %v2069 = vpop.permute.xlu0 %2068
          %2070 = vrot.lane.b32.xlu0 %v2025, 64
          %v2071 = vpop.permute.xlu0 %2070
          %2072 = vrot.lane.b32.xlu0 %v2026, 64
          %v2073 = vpop.permute.xlu0 %2072
          %2074 = vrot.lane.b32.xlu0 %v2027, 64
          %v2075 = vpop.permute.xlu0 %2074
          %vm2092 = vcmask 523264
          %v2093 = vsel %vm2092, %v2045, %v1706
          %v2094 = vsel %vm2092, %v2047, %v1721
          %v2095 = vsel %vm2092, %v2049, %v1736
          %v2096 = vsel %vm2092, %v2051, %v1751
          %v2097 = vsel %vm2092, %v2053, %v1766
          %v2098 = vsel %vm2092, %v2055, %v1781
          %v2099 = vsel %vm2092, %v2057, %v1796
          %v2100 = vsel %vm2092, %v2059, %v1811
          %v2101 = vsel %vm2092, %v2061, %v1826
          %v2102 = vsel %vm2092, %v2063, %v1841
          %v2103 = vsel %vm2092, %v2065, %v1856
          %v2104 = vsel %vm2092, %v2067, %v1871
          %v2105 = vsel %vm2092, %v2069, %v1886
          %v2106 = vsel %vm2092, %v2071, %v1901
          %v2107 = vsel %vm2092, %v2073, %v1916
          %v2108 = vsel %vm2092, %v2075, %v1931
          %2109 = vst [vmem:[%s306] sm:$0xff] %v2093
          %2110 = vst [vmem:[%s306 + $0x8] sm:$0xff] %v2094
          %2111 = vst [vmem:[%s306 + $0x10] sm:$0xff] %v2095
          %2112 = vst [vmem:[%s306 + $0x18] sm:$0xff] %v2096
          %2113 = vst [vmem:[%s306 + $0x20] sm:$0xff] %v2097
          %2114 = vst [vmem:[%s306 + $0x28] sm:$0xff] %v2098
          %2115 = vst [vmem:[%s306 + $0x30] sm:$0xff] %v2099
          %2116 = vst [vmem:[%s306 + $0x38] sm:$0xff] %v2100
          %2117 = vst [vmem:[%s306 + $0x40] sm:$0xff] %v2101
          %2118 = vst [vmem:[%s306 + $0x48] sm:$0xff] %v2102
          %2119 = vst [vmem:[%s306 + $0x50] sm:$0xff] %v2103
          %2120 = vst [vmem:[%s306 + $0x58] sm:$0xff] %v2104
          %2121 = vst [vmem:[%s306 + $0x60] sm:$0xff] %v2105
          %2122 = vst [vmem:[%s306 + $0x68] sm:$0xff] %v2106
          %2123 = vst [vmem:[%s306 + $0x70] sm:$0xff] %v2107
          %2124 = vst [vmem:[%s306 + $0x78] sm:$0xff] %v2108
        $region56: #{tpu_custom_call.1} parent=35 // pred_fallthru
          _
        %s2125 = sand.u32 %s143, 1
        %s2126 = scalar_lea.sflag [#allocation5], %s2125
        %s2127 = sand.u32 %s143, 1
        %s2128 = smul.addr %s2127, 128
        %s2129 = scalar_lea.vmem [#allocation9], %s2128
        // Predicated region
        $region57: #{tpu_custom_call.1} parent=35 // pred_check
          %p2130 = pneg %p153
        $region58: #{tpu_custom_call.1} parent=35 // pred_check_branch
          %2132 = sbr.rel (%p2130) target = $region60
        $region59: #{tpu_custom_call.1} parent=35 // pred_region
          %s2133 = smul.u32 16, %s26
          %2135 = vsyncadd %s2126, 0
          %s2136 = smul.addr %s2133, 8
          %s2137 = scalar_lea.hbm %s4, %s2136
          %s2138 = sshll.u32 %s2129, 4
          %s2139 = int_to_ptr.vmem [resolvable:$true] %s2138
          %s2140 = sshll.u32 %s2137, 4
          %s2141 = int_to_ptr.hbm [resolvable:$true] %s2140
          %2146 = dma.vmem_to_hbm [thread:$0]  %s2139, 2048, %s2141, %s2126, 128, 128, 8
        $region60: #{tpu_custom_call.1} parent=35 // pred_fallthru
          _
      $region36: #{tpu_custom_call.1} parent=5 // pred_fallthru
        _
      %p2147 = scmp.le.s32.totalorder 2, %s17
      // Predicated region
      $region61: #{tpu_custom_call.1} parent=5 // pred_check
        %p2148 = pneg %p2147
      $region62: #{tpu_custom_call.1} parent=5 // pred_check_branch
        %2150 = sbr.rel (%p2148) target = $region64
      $region63: #{tpu_custom_call.1} parent=5 // pred_region
        %s2151 = ssub.s32 %s17, 2
        // Predicated region
        $region65: #{tpu_custom_call.1} parent=63 // pred_check
          %p2152 = pneg %p159
        $region66: #{tpu_custom_call.1} parent=63 // pred_check_branch
          %2154 = sbr.rel (%p2152) target = $region68
        $region67: #{tpu_custom_call.1} parent=63 // pred_region
          %s2155 = sand.u32 %s144, 1
          %s2156 = scalar_lea.sflag [#allocation5], %s2155
          %s2157 = sand.u32 %s144, 1
          %s2158 = smul.addr %s2157, 128
          %s2159 = scalar_lea.vmem [#allocation9], %s2158
          %2161 = dma.done %s2156, 2048
        $region68: #{tpu_custom_call.1} parent=63 // pred_fallthru
          _
      $region64: #{tpu_custom_call.1} parent=5 // pred_fallthru
        _
    $region6: #{tpu_custom_call.1} parent=1 // loop_footer
      %s21 = sadd.s32 1, %s17
    $region7: #{tpu_custom_call.1} parent=1 // loop_footer_branch
      %16 = sbr.rel target = $region3
    $region8: #{tpu_custom_call.1} parent=1 // loop_exit
      _
    %2162 = vsyncpa [#allocation4], 1
    %s2163 = scalar_lea.sflag [#allocation4], 1
    %2164 = vsyncpa %s2163, 1
    %2165 = vsyncpa [#allocation7], 1
    %2166 = vsyncpa [#allocation5], 1
    %s2167 = scalar_lea.sflag [#allocation5], 1
    %2168 = vsyncpa %s2167, 1

</llo_original>
